<compile_context>
chip_gen: v5e
topology: v5e:2x2
jax: 0.10.0
libtpu: 0.0.40
codegen_flags: <defaults>
</compile_context>

<pallas_src>
import jax
import jax.numpy as jnp
from jax import lax
from jax.experimental import pallas as pl
from jax.experimental.pallas import tpu as pltpu


# ----------------------------------------------------------------------------
# Fused kernel: selection + box transform + tiled bilinear crop/resize
# ----------------------------------------------------------------------------
def _fused_kernel(scal_ref, boxes_t_ref, img_ref,
                  out_img_ref, out_boxes_ref,
                  acc_ref, crop_ref):
    """One (channel p, W-tile i) grid step.

    scal_ref      : SMEM (5 + 4*T,) f32  [thr, fb_xyxy, candidate_0 xyxy, ...]
    boxes_t_ref   : VMEM (4, N) f32      GT boxes transposed (lane-dense rows)
    img_ref       : VMEM (H, TW) bf16    one channel x one column tile
    out_img_ref   : VMEM (1, S, S) f32
    out_boxes_ref : VMEM (1, 4, N) f32   per-channel copy; host reads block 0
    acc_ref       : VMEM (H, S) f32      column-resampled accumulator
    crop_ref      : SMEM (4,) f32        [left, top, crop_w, crop_h]
    """
    H, TW = img_ref.shape
    S = out_img_ref.shape[1]
    T = (scal_ref.shape[0] - 5) // 4

    i = pl.program_id(1)
    n_wtiles = pl.num_programs(1)
    inv_s = 1.0 / S

    # --- first W tile of this channel: selection, boxes, accumulator init ----
    @pl.when(i == 0)
    def _select_and_init():
        thr = scal_ref[0]
        bt = boxes_t_ref[...]                                  # (4, N)
        bx1, by1 = bt[0:1, :], bt[1:2, :]                      # (1, N) lane-dense
        bx2, by2 = bt[2:3, :], bt[3:4, :]
        cx = 0.5 * (bx1 + bx2)
        cy = 0.5 * (by1 + by2)
        area_b = (bx2 - bx1) * (by2 - by1)

        # Start from the fallback rect: identity crop when thr >= 1.0
        # ("no-op" option), else the RandomResizedCrop sample.
        left = scal_ref[1]
        top = scal_ref[2]
        right = scal_ref[3]
        bottom = scal_ref[4]
        found = thr >= 1.0                                     # never overwrite if no-op

        # First-valid-candidate scan; candidates are SMEM scalars so every
        # vector op stays lane-dense over the N boxes (no strided slicing).
        for t in range(T):                                     # static unroll
            cl = scal_ref[5 + 4 * t + 0]
            ct = scal_ref[5 + 4 * t + 1]
            cr = scal_ref[5 + 4 * t + 2]
            cb = scal_ref[5 + 4 * t + 3]
            inside = (cl < cx) & (cx < cr) & (ct < cy) & (cy < cb)        # (1, N)
            ix1 = jnp.maximum(cl, bx1)
            iy1 = jnp.maximum(ct, by1)
            ix2 = jnp.minimum(cr, bx2)
            iy2 = jnp.minimum(cb, by2)
            inter = jnp.maximum(ix2 - ix1, 0.0) * jnp.maximum(iy2 - iy1, 0.0)
            area_c = (cr - cl) * (cb - ct)
            iou = inter / jnp.maximum(area_c + area_b - inter, 1e-12)     # (1, N)
            miou = jnp.max(jnp.where(inside, iou, -1.0), axis=1, keepdims=True)[0, 0]
            anyin = jnp.max(inside.astype(jnp.float32), axis=1, keepdims=True)[0, 0]
            valid = (anyin > 0.0) & (miou >= thr)
            take = valid & jnp.logical_not(found)
            left = jnp.where(take, cl, left)
            top = jnp.where(take, ct, top)
            right = jnp.where(take, cr, right)
            bottom = jnp.where(take, cb, bottom)
            found = found | valid

        cw = right - left
        ch = bottom - top
        crop_ref[0] = left
        crop_ref[1] = top
        crop_ref[2] = cw
        crop_ref[3] = ch

        # Boxes: translate into crop frame, clamp to the crop, rescale to S.
        # Exact scalar division (no approx reciprocal) for sub-pixel parity.
        sx = S / cw
        sy = S / ch
        ox1 = jnp.clip(bx1 - left, 0.0, cw) * sx
        oy1 = jnp.clip(by1 - top, 0.0, ch) * sy
        ox2 = jnp.clip(bx2 - left, 0.0, cw) * sx
        oy2 = jnp.clip(by2 - top, 0.0, ch) * sy
        out_boxes_ref[0] = jnp.concatenate(
            [ox1, oy1, ox2, oy2], axis=0).astype(out_boxes_ref.dtype)     # (4, N)

        acc_ref[...] = jnp.zeros_like(acc_ref)

    # --- every W tile: this tile's column tent weights + stage-A matmul ------
    left = crop_ref[0]
    cw = crop_ref[2]
    w0 = (i * TW).astype(jnp.float32)
    src_col = lax.broadcasted_iota(jnp.int32, (TW, S), 0).astype(jnp.float32) + w0
    out_col = lax.broadcasted_iota(jnp.int32, (TW, S), 1).astype(jnp.float32)
    # align_corners=False source coordinate, clamped to the CROP (edge replicate)
    sx_coord = jnp.clip((out_col + 0.5) * (cw * inv_s) - 0.5, 0.0, cw - 1.0) + left
    wx = jnp.maximum(0.0, 1.0 - jnp.abs(sx_coord - src_col))              # (TW, S) f32
    acc_ref[...] += jnp.dot(img_ref[...], wx.astype(jnp.bfloat16),
                            preferred_element_type=jnp.float32)           # (H, S)

    # --- last W tile: row tent weights + stage-B matmul, emit channel slab ---
    @pl.when(i == n_wtiles - 1)
    def _finalize():
        top = crop_ref[1]
        ch = crop_ref[3]
        out_row = lax.broadcasted_iota(jnp.int32, (S, H), 0).astype(jnp.float32)
        src_row = lax.broadcasted_iota(jnp.int32, (S, H), 1).astype(jnp.float32)
        sy_coord = jnp.clip((out_row + 0.5) * (ch * inv_s) - 0.5, 0.0, ch - 1.0) + top
        wy = jnp.maximum(0.0, 1.0 - jnp.abs(sy_coord - src_row))          # (S, H) f32
        out = jnp.dot(wy.astype(jnp.bfloat16), acc_ref[...].astype(jnp.bfloat16),
                      preferred_element_type=jnp.float32)                 # (S, S)
        out_img_ref[0] = out.astype(out_img_ref.dtype)


def _pick_col_tile(w):
    if w <= 512:
        return w
    for cand in (512, 256, 128):
        if w % cand == 0:
            return cand
    return w  # TODO(synk): ragged last tile needs masking; single-tile fallback


def _pallas_fused(scalars, boxes_t, img2d, *, C, H, W, S):
    N = boxes_t.shape[1]
    tw = _pick_col_tile(W)
    n_wtiles = W // tw

    flops = 2 * C * H * W * S + 2 * C * H * S * S
    bytes_accessed = (img2d.size * 2 + C * S * S * 4 + C * 4 * N * 4
                      + boxes_t.size * 4 + scalars.size * 4)

    # Working-set estimate: 2x bf16 image tile (double buffer) + f32 accumulator
    # + 2x (1,S,S) f32 output block + per-step weight temporaries.
    est_vmem = (2 * H * tw * 2 + H * S * 4 + 2 * S * S * 4
                + tw * S * 4 + S * H * 4 + 4 * 4 * N * 4)
    cp_kwargs = dict(dimension_semantics=("parallel", "arbitrary"))
    if est_vmem > 24 * 1024 * 1024:
        # Explicit scoped-VMEM budget for large images, capped at the v7x
        # physical 64 MiB; shrink `tw` if this ever trips.
        cp_kwargs["vmem_limit_bytes"] = min(max(2 * est_vmem, 32 * 1024 * 1024),
                                            64 * 1024 * 1024)

    return pl.pallas_call(
        _fused_kernel,
        grid=(C, n_wtiles),
        in_specs=[
            pl.BlockSpec(memory_space=pltpu.MemorySpace.SMEM),        # thr/fallback/cands
            pl.BlockSpec((4, N), lambda p, i: (0, 0)),                # boxes^T (resident)
            pl.BlockSpec((H, tw), lambda p, i: (p, i)),               # image tile (bf16)
        ],
        out_specs=(
            pl.BlockSpec((1, S, S), lambda p, i: (p, 0, 0)),          # out image
            pl.BlockSpec((1, 4, N), lambda p, i: (p, 0, 0)),          # out boxes (per chan)
        ),
        out_shape=(
            jax.ShapeDtypeStruct((C, S, S), jnp.float32),
            jax.ShapeDtypeStruct((C, 4, N), jnp.float32),
        ),
        scratch_shapes=[
            pltpu.VMEM((H, S), jnp.float32),     # stage-A accumulator
            pltpu.SMEM((4,), jnp.float32),       # chosen crop [left, top, w, h]
        ],
        compiler_params=pltpu.CompilerParams(**cp_kwargs),
        cost_estimate=pl.CostEstimate(flops=flops, transcendentals=0,
                                      bytes_accessed=bytes_accessed),
    )(scalars, boxes_t, img2d)


# ----------------------------------------------------------------------------
# Forward: RandomIoUCrop with RandomResizedCrop fallback
# ----------------------------------------------------------------------------
def random_iou_crop_with_fallback(
    key,
    image,
    boxes,
    *,
    min_scale=0.3,
    max_scale=1.0,
    min_aspect_ratio=0.5,
    max_aspect_ratio=2.0,
    sampler_options=(0.0, 0.1, 0.3, 0.5, 0.7, 0.9, 1.0),
    trials=8,
    rrc_scale=(0.08, 1.0),
    rrc_ratio=(3.0 / 4.0, 4.0 / 3.0),
    out_size=16,
):
    C, H, W = image.shape
    if C > 1:
        assert H % 8 == 0, "image height must be a multiple of 8 (sublane tiling)"
    k_opt, k_sc, k_off, k_area, k_ratio, k_i, k_j = jax.random.split(key, 7)

    options = jnp.asarray(sampler_options, jnp.float32)
    thr = options[jax.random.randint(k_opt, (), 0, options.shape[0])]

    # --- RandomIoUCrop candidate crops (randomness = host glue) ---
    r = jax.random.uniform(k_sc, (trials, 2), minval=min_scale, maxval=max_scale)
    new_w = jnp.floor(W * r[:, 0])
    new_h = jnp.floor(H * r[:, 1])
    ar = new_w / jnp.maximum(new_h, 1.0)
    geom_ok = (new_w >= 1.0) & (new_h >= 1.0) & \
              (ar >= min_aspect_ratio) & (ar <= max_aspect_ratio)
    u = jax.random.uniform(k_off, (trials, 2))
    left = jnp.floor((W - new_w) * u[:, 0])
    top = jnp.floor((H - new_h) * u[:, 1])
    crops = jnp.stack([left, top, left + new_w, top + new_h], axis=1).astype(jnp.float32)
    crops = jnp.where(geom_ok[:, None], crops, 0.0)   # degenerate -> never valid

    # --- RandomResizedCrop fallback region ---
    # TODO(synk): torchvision retries 10 times then center-crops; single clamped sample.
    area = H * W * jax.random.uniform(k_area, (), minval=rrc_scale[0], maxval=rrc_scale[1])
    log_ratio = jax.random.uniform(k_ratio, (), minval=jnp.log(rrc_ratio[0]),
                                   maxval=jnp.log(rrc_ratio[1]))
    ratio = jnp.exp(log_ratio)
    rw = jnp.clip(jnp.round(jnp.sqrt(area * ratio)), 1.0, float(W))
    rh = jnp.clip(jnp.round(jnp.sqrt(area / ratio)), 1.0, float(H))
    ri = jnp.floor(jax.random.uniform(k_i, ()) * (H - rh + 1.0))
    rj = jnp.floor(jax.random.uniform(k_j, ()) * (W - rw + 1.0))
    rrc_crop = jnp.stack([rj, ri, rj + rw, ri + rh]).astype(jnp.float32)     # (4,)

    # thr >= 1.0: RandomIoUCrop is a no-op -> identity (full) crop; otherwise the
    # fallback is the RandomResizedCrop sample (used only if no candidate is valid).
    full_crop = jnp.asarray([0.0, 0.0, float(W), float(H)], jnp.float32)
    fallback = jnp.where(thr >= 1.0, full_crop, rrc_crop)                    # (4,)

    scalars = jnp.concatenate([
        jnp.reshape(thr, (1,)),
        fallback,
        jnp.reshape(crops, (trials * 4,)),
    ]).astype(jnp.float32)                                                   # (5 + 4T,)

    out_img, out_boxes_all = _pallas_fused(
        scalars,
        boxes.T.astype(jnp.float32),                  # (4, N) lane-dense
        image.reshape(C * H, W).astype(jnp.bfloat16), # bf16 stream from HBM
        C=C, H=H, W=W, S=out_size,
    )
    return out_img, out_boxes_all[0].T                # (C,S,S), (N,4)


if __name__ == "__main__":
    key = jax.random.PRNGKey(0)
    k_img, k_box, k_fwd = jax.random.split(key, 3)

    C, H, W, N, S = 4, 16, 16, 8, 16
    image = jax.random.uniform(k_img, (C, H, W), jnp.float32)

    # deterministic well-formed XYXY boxes inside the image
    xy1 = jax.random.uniform(k_box, (N, 2), minval=0.0, maxval=W / 2)
    wh = jax.random.uniform(jax.random.fold_in(k_box, 1), (N, 2), minval=2.0, maxval=W / 2)
    boxes = jnp.concatenate([xy1, jnp.minimum(xy1 + wh, W - 1.0)], axis=1).astype(jnp.float32)

    out_img, out_boxes = random_iou_crop_with_fallback(k_fwd, image, boxes, out_size=S)
    jax.block_until_ready((out_img, out_boxes))

    assert out_img.shape == (C, S, S) and out_img.dtype == jnp.float32
    assert out_boxes.shape == (N, 4) and out_boxes.dtype == jnp.float32
    assert bool(jnp.all(jnp.isfinite(out_img))) and bool(jnp.all(jnp.isfinite(out_boxes)))
    print("KERNEL_OK")
</pallas_src>

<mosaic_0001>
module attributes {stable_mosaic.version = 11 : i64} {
  func.func @_fused_kernel(%arg0: i32, %arg1: i32, %arg2: memref<37xf32, #tpu.memory_space<smem>>, %arg3: memref<4x8xf32, #tpu.memory_space<vmem>>, %arg4: memref<16x16xbf16, #tpu.memory_space<vmem>>, %arg5: memref<1x16x16xf32, #tpu.memory_space<vmem>>, %arg6: memref<1x4x8xf32, #tpu.memory_space<vmem>>, %arg7: memref<16x16xf32, #tpu.memory_space<vmem>>, %arg8: memref<4xf32, #tpu.memory_space<smem>>) attributes {dimension_semantics = [#tpu.dimension_semantics<parallel>, #tpu.dimension_semantics<arbitrary>], iteration_bounds = array<i64: 4, 1>, scalar_prefetch = 0 : i64, scratch_operands = 2 : i64, tpu.core_type = #tpu.core_type<tc>, window_params = [{transform_indices = @transform_0, window_bounds = array<i64: 37>}, {pipeline_mode = #tpu.pipeline_mode<synchronous>, transform_indices = @transform_1, window_bounds = array<i64: 4, 8>}, {transform_indices = @transform_2, window_bounds = array<i64: 16, 16>}, {transform_indices = @transform_3, window_bounds = array<i64: 1, 16, 16>}, {transform_indices = @transform_4, window_bounds = array<i64: 1, 4, 8>}]} {
    %c0_i32 = arith.constant 0 : i32
    %0 = arith.cmpi eq, %arg1, %c0_i32 : i32
    %1 = arith.extui %0 : i1 to i32
    %c0_i32_0 = arith.constant 0 : i32
    %2 = arith.cmpi ne, %1, %c0_i32_0 : i32
    scf.if %2 {
      %c0_16 = arith.constant 0 : index
      %42 = memref.load %arg2[%c0_16] : memref<37xf32, #tpu.memory_space<smem>>
      %c0_17 = arith.constant 0 : index
      %c0_18 = arith.constant 0 : index
      %43 = vector.load %arg3[%c0_17, %c0_18] : memref<4x8xf32, #tpu.memory_space<vmem>>, vector<4x8xf32>
      %44 = vector.extract_strided_slice %43 {offsets = [0, 0], sizes = [1, 8], strides = [1, 1]} : vector<4x8xf32> to vector<1x8xf32>
      %45 = vector.extract_strided_slice %43 {offsets = [1, 0], sizes = [1, 8], strides = [1, 1]} : vector<4x8xf32> to vector<1x8xf32>
      %46 = vector.extract_strided_slice %43 {offsets = [2, 0], sizes = [1, 8], strides = [1, 1]} : vector<4x8xf32> to vector<1x8xf32>
      %47 = vector.extract_strided_slice %43 {offsets = [3, 0], sizes = [1, 8], strides = [1, 1]} : vector<4x8xf32> to vector<1x8xf32>
      %48 = arith.addf %44, %46 : vector<1x8xf32>
      %cst_19 = arith.constant 5.000000e-01 : f32
      %49 = vector.broadcast %cst_19 : f32 to vector<1x8xf32>
      %50 = arith.mulf %49, %48 : vector<1x8xf32>
      %51 = arith.addf %45, %47 : vector<1x8xf32>
      %cst_20 = arith.constant 5.000000e-01 : f32
      %52 = vector.broadcast %cst_20 : f32 to vector<1x8xf32>
      %53 = arith.mulf %52, %51 : vector<1x8xf32>
      %54 = arith.subf %46, %44 : vector<1x8xf32>
      %55 = arith.subf %47, %45 : vector<1x8xf32>
      %56 = arith.mulf %54, %55 : vector<1x8xf32>
      %c1 = arith.constant 1 : index
      %57 = memref.load %arg2[%c1] : memref<37xf32, #tpu.memory_space<smem>>
      %c2_21 = arith.constant 2 : index
      %58 = memref.load %arg2[%c2_21] : memref<37xf32, #tpu.memory_space<smem>>
      %c3 = arith.constant 3 : index
      %59 = memref.load %arg2[%c3] : memref<37xf32, #tpu.memory_space<smem>>
      %c4 = arith.constant 4 : index
      %60 = memref.load %arg2[%c4] : memref<37xf32, #tpu.memory_space<smem>>
      %cst_22 = arith.constant 1.000000e+00 : f32
      %61 = arith.cmpf oge, %42, %cst_22 : f32
      %c5 = arith.constant 5 : index
      %62 = memref.load %arg2[%c5] : memref<37xf32, #tpu.memory_space<smem>>
      %c6 = arith.constant 6 : index
      %63 = memref.load %arg2[%c6] : memref<37xf32, #tpu.memory_space<smem>>
      %c7 = arith.constant 7 : index
      %64 = memref.load %arg2[%c7] : memref<37xf32, #tpu.memory_space<smem>>
      %c8 = arith.constant 8 : index
      %65 = memref.load %arg2[%c8] : memref<37xf32, #tpu.memory_space<smem>>
      %66 = vector.broadcast %62 : f32 to vector<1x8xf32>
      %67 = arith.cmpf olt, %66, %50 : vector<1x8xf32>
      %68 = vector.broadcast %64 : f32 to vector<1x8xf32>
      %69 = arith.cmpf olt, %50, %68 : vector<1x8xf32>
      %70 = arith.andi %67, %69 : vector<1x8xi1>
      %71 = vector.broadcast %63 : f32 to vector<1x8xf32>
      %72 = arith.cmpf olt, %71, %53 : vector<1x8xf32>
      %73 = arith.andi %70, %72 : vector<1x8xi1>
      %74 = vector.broadcast %65 : f32 to vector<1x8xf32>
      %75 = arith.cmpf olt, %53, %74 : vector<1x8xf32>
      %76 = arith.andi %73, %75 : vector<1x8xi1>
      %77 = vector.broadcast %62 : f32 to vector<1x8xf32>
      %78 = arith.maximumf %77, %44 : vector<1x8xf32>
      %79 = vector.broadcast %63 : f32 to vector<1x8xf32>
      %80 = arith.maximumf %79, %45 : vector<1x8xf32>
      %81 = vector.broadcast %64 : f32 to vector<1x8xf32>
      %82 = arith.minimumf %81, %46 : vector<1x8xf32>
      %83 = vector.broadcast %65 : f32 to vector<1x8xf32>
      %84 = arith.minimumf %83, %47 : vector<1x8xf32>
      %85 = arith.subf %82, %78 : vector<1x8xf32>
      %cst_23 = arith.constant 0.000000e+00 : f32
      %86 = vector.broadcast %cst_23 : f32 to vector<1x8xf32>
      %87 = arith.maximumf %85, %86 : vector<1x8xf32>
      %88 = arith.subf %84, %80 : vector<1x8xf32>
      %cst_24 = arith.constant 0.000000e+00 : f32
      %89 = vector.broadcast %cst_24 : f32 to vector<1x8xf32>
      %90 = arith.maximumf %88, %89 : vector<1x8xf32>
      %91 = arith.mulf %87, %90 : vector<1x8xf32>
      %92 = arith.subf %64, %62 : f32
      %93 = arith.subf %65, %63 : f32
      %94 = arith.mulf %92, %93 : f32
      %95 = vector.broadcast %94 : f32 to vector<1x8xf32>
      %96 = arith.addf %95, %56 : vector<1x8xf32>
      %97 = arith.subf %96, %91 : vector<1x8xf32>
      %cst_25 = arith.constant 9.99999996E-13 : f32
      %98 = vector.broadcast %cst_25 : f32 to vector<1x8xf32>
      %99 = arith.maximumf %97, %98 : vector<1x8xf32>
      %100 = arith.divf %91, %99 : vector<1x8xf32>
      %cst_26 = arith.constant -1.000000e+00 : f32
      %101 = vector.broadcast %cst_26 : f32 to vector<1x8xf32>
      %102 = arith.select %76, %100, %101 : vector<1x8xi1>, vector<1x8xf32>
      %cst_27 = arith.constant dense<0xFF800000> : vector<1xf32>
      %103 = vector.multi_reduction <maximumf>, %102, %cst_27 [1] : vector<1x8xf32> to vector<1xf32>
      %104 = vector.shape_cast %103 : vector<1xf32> to vector<1x1xf32>
      %105 = vector.extract %104[0, 0] : f32 from vector<1x1xf32>
      %106 = arith.extui %76 : vector<1x8xi1> to vector<1x8xi32>
      %107 = arith.sitofp %106 : vector<1x8xi32> to vector<1x8xf32>
      %cst_28 = arith.constant dense<0xFF800000> : vector<1xf32>
      %108 = vector.multi_reduction <maximumf>, %107, %cst_28 [1] : vector<1x8xf32> to vector<1xf32>
      %109 = vector.shape_cast %108 : vector<1xf32> to vector<1x1xf32>
      %110 = vector.extract %109[0, 0] : f32 from vector<1x1xf32>
      %cst_29 = arith.constant 0.000000e+00 : f32
      %111 = arith.cmpf ogt, %110, %cst_29 : f32
      %112 = arith.cmpf oge, %105, %42 : f32
      %113 = arith.andi %111, %112 : i1
      %true = arith.constant true
      %114 = arith.xori %61, %true : i1
      %115 = arith.andi %113, %114 : i1
      %116 = arith.select %115, %62, %57 : f32
      %117 = arith.select %115, %63, %58 : f32
      %118 = arith.select %115, %64, %59 : f32
      %119 = arith.select %115, %65, %60 : f32
      %120 = arith.ori %61, %113 : i1
      %c9 = arith.constant 9 : index
      %121 = memref.load %arg2[%c9] : memref<37xf32, #tpu.memory_space<smem>>
      %c10 = arith.constant 10 : index
      %122 = memref.load %arg2[%c10] : memref<37xf32, #tpu.memory_space<smem>>
      %c11 = arith.constant 11 : index
      %123 = memref.load %arg2[%c11] : memref<37xf32, #tpu.memory_space<smem>>
      %c12 = arith.constant 12 : index
      %124 = memref.load %arg2[%c12] : memref<37xf32, #tpu.memory_space<smem>>
      %125 = vector.broadcast %121 : f32 to vector<1x8xf32>
      %126 = arith.cmpf olt, %125, %50 : vector<1x8xf32>
      %127 = vector.broadcast %123 : f32 to vector<1x8xf32>
      %128 = arith.cmpf olt, %50, %127 : vector<1x8xf32>
      %129 = arith.andi %126, %128 : vector<1x8xi1>
      %130 = vector.broadcast %122 : f32 to vector<1x8xf32>
      %131 = arith.cmpf olt, %130, %53 : vector<1x8xf32>
      %132 = arith.andi %129, %131 : vector<1x8xi1>
      %133 = vector.broadcast %124 : f32 to vector<1x8xf32>
      %134 = arith.cmpf olt, %53, %133 : vector<1x8xf32>
      %135 = arith.andi %132, %134 : vector<1x8xi1>
      %136 = vector.broadcast %121 : f32 to vector<1x8xf32>
      %137 = arith.maximumf %136, %44 : vector<1x8xf32>
      %138 = vector.broadcast %122 : f32 to vector<1x8xf32>
      %139 = arith.maximumf %138, %45 : vector<1x8xf32>
      %140 = vector.broadcast %123 : f32 to vector<1x8xf32>
      %141 = arith.minimumf %140, %46 : vector<1x8xf32>
      %142 = vector.broadcast %124 : f32 to vector<1x8xf32>
      %143 = arith.minimumf %142, %47 : vector<1x8xf32>
      %144 = arith.subf %141, %137 : vector<1x8xf32>
      %cst_30 = arith.constant 0.000000e+00 : f32
      %145 = vector.broadcast %cst_30 : f32 to vector<1x8xf32>
      %146 = arith.maximumf %144, %145 : vector<1x8xf32>
      %147 = arith.subf %143, %139 : vector<1x8xf32>
      %cst_31 = arith.constant 0.000000e+00 : f32
      %148 = vector.broadcast %cst_31 : f32 to vector<1x8xf32>
      %149 = arith.maximumf %147, %148 : vector<1x8xf32>
      %150 = arith.mulf %146, %149 : vector<1x8xf32>
      %151 = arith.subf %123, %121 : f32
      %152 = arith.subf %124, %122 : f32
      %153 = arith.mulf %151, %152 : f32
      %154 = vector.broadcast %153 : f32 to vector<1x8xf32>
      %155 = arith.addf %154, %56 : vector<1x8xf32>
      %156 = arith.subf %155, %150 : vector<1x8xf32>
      %cst_32 = arith.constant 9.99999996E-13 : f32
      %157 = vector.broadcast %cst_32 : f32 to vector<1x8xf32>
      %158 = arith.maximumf %156, %157 : vector<1x8xf32>
      %159 = arith.divf %150, %158 : vector<1x8xf32>
      %cst_33 = arith.constant -1.000000e+00 : f32
      %160 = vector.broadcast %cst_33 : f32 to vector<1x8xf32>
      %161 = arith.select %135, %159, %160 : vector<1x8xi1>, vector<1x8xf32>
      %cst_34 = arith.constant dense<0xFF800000> : vector<1xf32>
      %162 = vector.multi_reduction <maximumf>, %161, %cst_34 [1] : vector<1x8xf32> to vector<1xf32>
      %163 = vector.shape_cast %162 : vector<1xf32> to vector<1x1xf32>
      %164 = vector.extract %163[0, 0] : f32 from vector<1x1xf32>
      %165 = arith.extui %135 : vector<1x8xi1> to vector<1x8xi32>
      %166 = arith.sitofp %165 : vector<1x8xi32> to vector<1x8xf32>
      %cst_35 = arith.constant dense<0xFF800000> : vector<1xf32>
      %167 = vector.multi_reduction <maximumf>, %166, %cst_35 [1] : vector<1x8xf32> to vector<1xf32>
      %168 = vector.shape_cast %167 : vector<1xf32> to vector<1x1xf32>
      %169 = vector.extract %168[0, 0] : f32 from vector<1x1xf32>
      %cst_36 = arith.constant 0.000000e+00 : f32
      %170 = arith.cmpf ogt, %169, %cst_36 : f32
      %171 = arith.cmpf oge, %164, %42 : f32
      %172 = arith.andi %170, %171 : i1
      %true_37 = arith.constant true
      %173 = arith.xori %120, %true_37 : i1
      %174 = arith.andi %172, %173 : i1
      %175 = arith.select %174, %121, %116 : f32
      %176 = arith.select %174, %122, %117 : f32
      %177 = arith.select %174, %123, %118 : f32
      %178 = arith.select %174, %124, %119 : f32
      %179 = arith.ori %120, %172 : i1
      %c13 = arith.constant 13 : index
      %180 = memref.load %arg2[%c13] : memref<37xf32, #tpu.memory_space<smem>>
      %c14 = arith.constant 14 : index
      %181 = memref.load %arg2[%c14] : memref<37xf32, #tpu.memory_space<smem>>
      %c15 = arith.constant 15 : index
      %182 = memref.load %arg2[%c15] : memref<37xf32, #tpu.memory_space<smem>>
      %c16 = arith.constant 16 : index
      %183 = memref.load %arg2[%c16] : memref<37xf32, #tpu.memory_space<smem>>
      %184 = vector.broadcast %180 : f32 to vector<1x8xf32>
      %185 = arith.cmpf olt, %184, %50 : vector<1x8xf32>
      %186 = vector.broadcast %182 : f32 to vector<1x8xf32>
      %187 = arith.cmpf olt, %50, %186 : vector<1x8xf32>
      %188 = arith.andi %185, %187 : vector<1x8xi1>
      %189 = vector.broadcast %181 : f32 to vector<1x8xf32>
      %190 = arith.cmpf olt, %189, %53 : vector<1x8xf32>
      %191 = arith.andi %188, %190 : vector<1x8xi1>
      %192 = vector.broadcast %183 : f32 to vector<1x8xf32>
      %193 = arith.cmpf olt, %53, %192 : vector<1x8xf32>
      %194 = arith.andi %191, %193 : vector<1x8xi1>
      %195 = vector.broadcast %180 : f32 to vector<1x8xf32>
      %196 = arith.maximumf %195, %44 : vector<1x8xf32>
      %197 = vector.broadcast %181 : f32 to vector<1x8xf32>
      %198 = arith.maximumf %197, %45 : vector<1x8xf32>
      %199 = vector.broadcast %182 : f32 to vector<1x8xf32>
      %200 = arith.minimumf %199, %46 : vector<1x8xf32>
      %201 = vector.broadcast %183 : f32 to vector<1x8xf32>
      %202 = arith.minimumf %201, %47 : vector<1x8xf32>
      %203 = arith.subf %200, %196 : vector<1x8xf32>
      %cst_38 = arith.constant 0.000000e+00 : f32
      %204 = vector.broadcast %cst_38 : f32 to vector<1x8xf32>
      %205 = arith.maximumf %203, %204 : vector<1x8xf32>
      %206 = arith.subf %202, %198 : vector<1x8xf32>
      %cst_39 = arith.constant 0.000000e+00 : f32
      %207 = vector.broadcast %cst_39 : f32 to vector<1x8xf32>
      %208 = arith.maximumf %206, %207 : vector<1x8xf32>
      %209 = arith.mulf %205, %208 : vector<1x8xf32>
      %210 = arith.subf %182, %180 : f32
      %211 = arith.subf %183, %181 : f32
      %212 = arith.mulf %210, %211 : f32
      %213 = vector.broadcast %212 : f32 to vector<1x8xf32>
      %214 = arith.addf %213, %56 : vector<1x8xf32>
      %215 = arith.subf %214, %209 : vector<1x8xf32>
      %cst_40 = arith.constant 9.99999996E-13 : f32
      %216 = vector.broadcast %cst_40 : f32 to vector<1x8xf32>
      %217 = arith.maximumf %215, %216 : vector<1x8xf32>
      %218 = arith.divf %209, %217 : vector<1x8xf32>
      %cst_41 = arith.constant -1.000000e+00 : f32
      %219 = vector.broadcast %cst_41 : f32 to vector<1x8xf32>
      %220 = arith.select %194, %218, %219 : vector<1x8xi1>, vector<1x8xf32>
      %cst_42 = arith.constant dense<0xFF800000> : vector<1xf32>
      %221 = vector.multi_reduction <maximumf>, %220, %cst_42 [1] : vector<1x8xf32> to vector<1xf32>
      %222 = vector.shape_cast %221 : vector<1xf32> to vector<1x1xf32>
      %223 = vector.extract %222[0, 0] : f32 from vector<1x1xf32>
      %224 = arith.extui %194 : vector<1x8xi1> to vector<1x8xi32>
      %225 = arith.sitofp %224 : vector<1x8xi32> to vector<1x8xf32>
      %cst_43 = arith.constant dense<0xFF800000> : vector<1xf32>
      %226 = vector.multi_reduction <maximumf>, %225, %cst_43 [1] : vector<1x8xf32> to vector<1xf32>
      %227 = vector.shape_cast %226 : vector<1xf32> to vector<1x1xf32>
      %228 = vector.extract %227[0, 0] : f32 from vector<1x1xf32>
      %cst_44 = arith.constant 0.000000e+00 : f32
      %229 = arith.cmpf ogt, %228, %cst_44 : f32
      %230 = arith.cmpf oge, %223, %42 : f32
      %231 = arith.andi %229, %230 : i1
      %true_45 = arith.constant true
      %232 = arith.xori %179, %true_45 : i1
      %233 = arith.andi %231, %232 : i1
      %234 = arith.select %233, %180, %175 : f32
      %235 = arith.select %233, %181, %176 : f32
      %236 = arith.select %233, %182, %177 : f32
      %237 = arith.select %233, %183, %178 : f32
      %238 = arith.ori %179, %231 : i1
      %c17 = arith.constant 17 : index
      %239 = memref.load %arg2[%c17] : memref<37xf32, #tpu.memory_space<smem>>
      %c18 = arith.constant 18 : index
      %240 = memref.load %arg2[%c18] : memref<37xf32, #tpu.memory_space<smem>>
      %c19 = arith.constant 19 : index
      %241 = memref.load %arg2[%c19] : memref<37xf32, #tpu.memory_space<smem>>
      %c20 = arith.constant 20 : index
      %242 = memref.load %arg2[%c20] : memref<37xf32, #tpu.memory_space<smem>>
      %243 = vector.broadcast %239 : f32 to vector<1x8xf32>
      %244 = arith.cmpf olt, %243, %50 : vector<1x8xf32>
      %245 = vector.broadcast %241 : f32 to vector<1x8xf32>
      %246 = arith.cmpf olt, %50, %245 : vector<1x8xf32>
      %247 = arith.andi %244, %246 : vector<1x8xi1>
      %248 = vector.broadcast %240 : f32 to vector<1x8xf32>
      %249 = arith.cmpf olt, %248, %53 : vector<1x8xf32>
      %250 = arith.andi %247, %249 : vector<1x8xi1>
      %251 = vector.broadcast %242 : f32 to vector<1x8xf32>
      %252 = arith.cmpf olt, %53, %251 : vector<1x8xf32>
      %253 = arith.andi %250, %252 : vector<1x8xi1>
      %254 = vector.broadcast %239 : f32 to vector<1x8xf32>
      %255 = arith.maximumf %254, %44 : vector<1x8xf32>
      %256 = vector.broadcast %240 : f32 to vector<1x8xf32>
      %257 = arith.maximumf %256, %45 : vector<1x8xf32>
      %258 = vector.broadcast %241 : f32 to vector<1x8xf32>
      %259 = arith.minimumf %258, %46 : vector<1x8xf32>
      %260 = vector.broadcast %242 : f32 to vector<1x8xf32>
      %261 = arith.minimumf %260, %47 : vector<1x8xf32>
      %262 = arith.subf %259, %255 : vector<1x8xf32>
      %cst_46 = arith.constant 0.000000e+00 : f32
      %263 = vector.broadcast %cst_46 : f32 to vector<1x8xf32>
      %264 = arith.maximumf %262, %263 : vector<1x8xf32>
      %265 = arith.subf %261, %257 : vector<1x8xf32>
      %cst_47 = arith.constant 0.000000e+00 : f32
      %266 = vector.broadcast %cst_47 : f32 to vector<1x8xf32>
      %267 = arith.maximumf %265, %266 : vector<1x8xf32>
      %268 = arith.mulf %264, %267 : vector<1x8xf32>
      %269 = arith.subf %241, %239 : f32
      %270 = arith.subf %242, %240 : f32
      %271 = arith.mulf %269, %270 : f32
      %272 = vector.broadcast %271 : f32 to vector<1x8xf32>
      %273 = arith.addf %272, %56 : vector<1x8xf32>
      %274 = arith.subf %273, %268 : vector<1x8xf32>
      %cst_48 = arith.constant 9.99999996E-13 : f32
      %275 = vector.broadcast %cst_48 : f32 to vector<1x8xf32>
      %276 = arith.maximumf %274, %275 : vector<1x8xf32>
      %277 = arith.divf %268, %276 : vector<1x8xf32>
      %cst_49 = arith.constant -1.000000e+00 : f32
      %278 = vector.broadcast %cst_49 : f32 to vector<1x8xf32>
      %279 = arith.select %253, %277, %278 : vector<1x8xi1>, vector<1x8xf32>
      %cst_50 = arith.constant dense<0xFF800000> : vector<1xf32>
      %280 = vector.multi_reduction <maximumf>, %279, %cst_50 [1] : vector<1x8xf32> to vector<1xf32>
      %281 = vector.shape_cast %280 : vector<1xf32> to vector<1x1xf32>
      %282 = vector.extract %281[0, 0] : f32 from vector<1x1xf32>
      %283 = arith.extui %253 : vector<1x8xi1> to vector<1x8xi32>
      %284 = arith.sitofp %283 : vector<1x8xi32> to vector<1x8xf32>
      %cst_51 = arith.constant dense<0xFF800000> : vector<1xf32>
      %285 = vector.multi_reduction <maximumf>, %284, %cst_51 [1] : vector<1x8xf32> to vector<1xf32>
      %286 = vector.shape_cast %285 : vector<1xf32> to vector<1x1xf32>
      %287 = vector.extract %286[0, 0] : f32 from vector<1x1xf32>
      %cst_52 = arith.constant 0.000000e+00 : f32
      %288 = arith.cmpf ogt, %287, %cst_52 : f32
      %289 = arith.cmpf oge, %282, %42 : f32
      %290 = arith.andi %288, %289 : i1
      %true_53 = arith.constant true
      %291 = arith.xori %238, %true_53 : i1
      %292 = arith.andi %290, %291 : i1
      %293 = arith.select %292, %239, %234 : f32
      %294 = arith.select %292, %240, %235 : f32
      %295 = arith.select %292, %241, %236 : f32
      %296 = arith.select %292, %242, %237 : f32
      %297 = arith.ori %238, %290 : i1
      %c21 = arith.constant 21 : index
      %298 = memref.load %arg2[%c21] : memref<37xf32, #tpu.memory_space<smem>>
      %c22 = arith.constant 22 : index
      %299 = memref.load %arg2[%c22] : memref<37xf32, #tpu.memory_space<smem>>
      %c23 = arith.constant 23 : index
      %300 = memref.load %arg2[%c23] : memref<37xf32, #tpu.memory_space<smem>>
      %c24 = arith.constant 24 : index
      %301 = memref.load %arg2[%c24] : memref<37xf32, #tpu.memory_space<smem>>
      %302 = vector.broadcast %298 : f32 to vector<1x8xf32>
      %303 = arith.cmpf olt, %302, %50 : vector<1x8xf32>
      %304 = vector.broadcast %300 : f32 to vector<1x8xf32>
      %305 = arith.cmpf olt, %50, %304 : vector<1x8xf32>
      %306 = arith.andi %303, %305 : vector<1x8xi1>
      %307 = vector.broadcast %299 : f32 to vector<1x8xf32>
      %308 = arith.cmpf olt, %307, %53 : vector<1x8xf32>
      %309 = arith.andi %306, %308 : vector<1x8xi1>
      %310 = vector.broadcast %301 : f32 to vector<1x8xf32>
      %311 = arith.cmpf olt, %53, %310 : vector<1x8xf32>
      %312 = arith.andi %309, %311 : vector<1x8xi1>
      %313 = vector.broadcast %298 : f32 to vector<1x8xf32>
      %314 = arith.maximumf %313, %44 : vector<1x8xf32>
      %315 = vector.broadcast %299 : f32 to vector<1x8xf32>
      %316 = arith.maximumf %315, %45 : vector<1x8xf32>
      %317 = vector.broadcast %300 : f32 to vector<1x8xf32>
      %318 = arith.minimumf %317, %46 : vector<1x8xf32>
      %319 = vector.broadcast %301 : f32 to vector<1x8xf32>
      %320 = arith.minimumf %319, %47 : vector<1x8xf32>
      %321 = arith.subf %318, %314 : vector<1x8xf32>
      %cst_54 = arith.constant 0.000000e+00 : f32
      %322 = vector.broadcast %cst_54 : f32 to vector<1x8xf32>
      %323 = arith.maximumf %321, %322 : vector<1x8xf32>
      %324 = arith.subf %320, %316 : vector<1x8xf32>
      %cst_55 = arith.constant 0.000000e+00 : f32
      %325 = vector.broadcast %cst_55 : f32 to vector<1x8xf32>
      %326 = arith.maximumf %324, %325 : vector<1x8xf32>
      %327 = arith.mulf %323, %326 : vector<1x8xf32>
      %328 = arith.subf %300, %298 : f32
      %329 = arith.subf %301, %299 : f32
      %330 = arith.mulf %328, %329 : f32
      %331 = vector.broadcast %330 : f32 to vector<1x8xf32>
      %332 = arith.addf %331, %56 : vector<1x8xf32>
      %333 = arith.subf %332, %327 : vector<1x8xf32>
      %cst_56 = arith.constant 9.99999996E-13 : f32
      %334 = vector.broadcast %cst_56 : f32 to vector<1x8xf32>
      %335 = arith.maximumf %333, %334 : vector<1x8xf32>
      %336 = arith.divf %327, %335 : vector<1x8xf32>
      %cst_57 = arith.constant -1.000000e+00 : f32
      %337 = vector.broadcast %cst_57 : f32 to vector<1x8xf32>
      %338 = arith.select %312, %336, %337 : vector<1x8xi1>, vector<1x8xf32>
      %cst_58 = arith.constant dense<0xFF800000> : vector<1xf32>
      %339 = vector.multi_reduction <maximumf>, %338, %cst_58 [1] : vector<1x8xf32> to vector<1xf32>
      %340 = vector.shape_cast %339 : vector<1xf32> to vector<1x1xf32>
      %341 = vector.extract %340[0, 0] : f32 from vector<1x1xf32>
      %342 = arith.extui %312 : vector<1x8xi1> to vector<1x8xi32>
      %343 = arith.sitofp %342 : vector<1x8xi32> to vector<1x8xf32>
      %cst_59 = arith.constant dense<0xFF800000> : vector<1xf32>
      %344 = vector.multi_reduction <maximumf>, %343, %cst_59 [1] : vector<1x8xf32> to vector<1xf32>
      %345 = vector.shape_cast %344 : vector<1xf32> to vector<1x1xf32>
      %346 = vector.extract %345[0, 0] : f32 from vector<1x1xf32>
      %cst_60 = arith.constant 0.000000e+00 : f32
      %347 = arith.cmpf ogt, %346, %cst_60 : f32
      %348 = arith.cmpf oge, %341, %42 : f32
      %349 = arith.andi %347, %348 : i1
      %true_61 = arith.constant true
      %350 = arith.xori %297, %true_61 : i1
      %351 = arith.andi %349, %350 : i1
      %352 = arith.select %351, %298, %293 : f32
      %353 = arith.select %351, %299, %294 : f32
      %354 = arith.select %351, %300, %295 : f32
      %355 = arith.select %351, %301, %296 : f32
      %356 = arith.ori %297, %349 : i1
      %c25 = arith.constant 25 : index
      %357 = memref.load %arg2[%c25] : memref<37xf32, #tpu.memory_space<smem>>
      %c26 = arith.constant 26 : index
      %358 = memref.load %arg2[%c26] : memref<37xf32, #tpu.memory_space<smem>>
      %c27 = arith.constant 27 : index
      %359 = memref.load %arg2[%c27] : memref<37xf32, #tpu.memory_space<smem>>
      %c28 = arith.constant 28 : index
      %360 = memref.load %arg2[%c28] : memref<37xf32, #tpu.memory_space<smem>>
      %361 = vector.broadcast %357 : f32 to vector<1x8xf32>
      %362 = arith.cmpf olt, %361, %50 : vector<1x8xf32>
      %363 = vector.broadcast %359 : f32 to vector<1x8xf32>
      %364 = arith.cmpf olt, %50, %363 : vector<1x8xf32>
      %365 = arith.andi %362, %364 : vector<1x8xi1>
      %366 = vector.broadcast %358 : f32 to vector<1x8xf32>
      %367 = arith.cmpf olt, %366, %53 : vector<1x8xf32>
      %368 = arith.andi %365, %367 : vector<1x8xi1>
      %369 = vector.broadcast %360 : f32 to vector<1x8xf32>
      %370 = arith.cmpf olt, %53, %369 : vector<1x8xf32>
      %371 = arith.andi %368, %370 : vector<1x8xi1>
      %372 = vector.broadcast %357 : f32 to vector<1x8xf32>
      %373 = arith.maximumf %372, %44 : vector<1x8xf32>
      %374 = vector.broadcast %358 : f32 to vector<1x8xf32>
      %375 = arith.maximumf %374, %45 : vector<1x8xf32>
      %376 = vector.broadcast %359 : f32 to vector<1x8xf32>
      %377 = arith.minimumf %376, %46 : vector<1x8xf32>
      %378 = vector.broadcast %360 : f32 to vector<1x8xf32>
      %379 = arith.minimumf %378, %47 : vector<1x8xf32>
      %380 = arith.subf %377, %373 : vector<1x8xf32>
      %cst_62 = arith.constant 0.000000e+00 : f32
      %381 = vector.broadcast %cst_62 : f32 to vector<1x8xf32>
      %382 = arith.maximumf %380, %381 : vector<1x8xf32>
      %383 = arith.subf %379, %375 : vector<1x8xf32>
      %cst_63 = arith.constant 0.000000e+00 : f32
      %384 = vector.broadcast %cst_63 : f32 to vector<1x8xf32>
      %385 = arith.maximumf %383, %384 : vector<1x8xf32>
      %386 = arith.mulf %382, %385 : vector<1x8xf32>
      %387 = arith.subf %359, %357 : f32
      %388 = arith.subf %360, %358 : f32
      %389 = arith.mulf %387, %388 : f32
      %390 = vector.broadcast %389 : f32 to vector<1x8xf32>
      %391 = arith.addf %390, %56 : vector<1x8xf32>
      %392 = arith.subf %391, %386 : vector<1x8xf32>
      %cst_64 = arith.constant 9.99999996E-13 : f32
      %393 = vector.broadcast %cst_64 : f32 to vector<1x8xf32>
      %394 = arith.maximumf %392, %393 : vector<1x8xf32>
      %395 = arith.divf %386, %394 : vector<1x8xf32>
      %cst_65 = arith.constant -1.000000e+00 : f32
      %396 = vector.broadcast %cst_65 : f32 to vector<1x8xf32>
      %397 = arith.select %371, %395, %396 : vector<1x8xi1>, vector<1x8xf32>
      %cst_66 = arith.constant dense<0xFF800000> : vector<1xf32>
      %398 = vector.multi_reduction <maximumf>, %397, %cst_66 [1] : vector<1x8xf32> to vector<1xf32>
      %399 = vector.shape_cast %398 : vector<1xf32> to vector<1x1xf32>
      %400 = vector.extract %399[0, 0] : f32 from vector<1x1xf32>
      %401 = arith.extui %371 : vector<1x8xi1> to vector<1x8xi32>
      %402 = arith.sitofp %401 : vector<1x8xi32> to vector<1x8xf32>
      %cst_67 = arith.constant dense<0xFF800000> : vector<1xf32>
      %403 = vector.multi_reduction <maximumf>, %402, %cst_67 [1] : vector<1x8xf32> to vector<1xf32>
      %404 = vector.shape_cast %403 : vector<1xf32> to vector<1x1xf32>
      %405 = vector.extract %404[0, 0] : f32 from vector<1x1xf32>
      %cst_68 = arith.constant 0.000000e+00 : f32
      %406 = arith.cmpf ogt, %405, %cst_68 : f32
      %407 = arith.cmpf oge, %400, %42 : f32
      %408 = arith.andi %406, %407 : i1
      %true_69 = arith.constant true
      %409 = arith.xori %356, %true_69 : i1
      %410 = arith.andi %408, %409 : i1
      %411 = arith.select %410, %357, %352 : f32
      %412 = arith.select %410, %358, %353 : f32
      %413 = arith.select %410, %359, %354 : f32
      %414 = arith.select %410, %360, %355 : f32
      %415 = arith.ori %356, %408 : i1
      %c29 = arith.constant 29 : index
      %416 = memref.load %arg2[%c29] : memref<37xf32, #tpu.memory_space<smem>>
      %c30 = arith.constant 30 : index
      %417 = memref.load %arg2[%c30] : memref<37xf32, #tpu.memory_space<smem>>
      %c31 = arith.constant 31 : index
      %418 = memref.load %arg2[%c31] : memref<37xf32, #tpu.memory_space<smem>>
      %c32 = arith.constant 32 : index
      %419 = memref.load %arg2[%c32] : memref<37xf32, #tpu.memory_space<smem>>
      %420 = vector.broadcast %416 : f32 to vector<1x8xf32>
      %421 = arith.cmpf olt, %420, %50 : vector<1x8xf32>
      %422 = vector.broadcast %418 : f32 to vector<1x8xf32>
      %423 = arith.cmpf olt, %50, %422 : vector<1x8xf32>
      %424 = arith.andi %421, %423 : vector<1x8xi1>
      %425 = vector.broadcast %417 : f32 to vector<1x8xf32>
      %426 = arith.cmpf olt, %425, %53 : vector<1x8xf32>
      %427 = arith.andi %424, %426 : vector<1x8xi1>
      %428 = vector.broadcast %419 : f32 to vector<1x8xf32>
      %429 = arith.cmpf olt, %53, %428 : vector<1x8xf32>
      %430 = arith.andi %427, %429 : vector<1x8xi1>
      %431 = vector.broadcast %416 : f32 to vector<1x8xf32>
      %432 = arith.maximumf %431, %44 : vector<1x8xf32>
      %433 = vector.broadcast %417 : f32 to vector<1x8xf32>
      %434 = arith.maximumf %433, %45 : vector<1x8xf32>
      %435 = vector.broadcast %418 : f32 to vector<1x8xf32>
      %436 = arith.minimumf %435, %46 : vector<1x8xf32>
      %437 = vector.broadcast %419 : f32 to vector<1x8xf32>
      %438 = arith.minimumf %437, %47 : vector<1x8xf32>
      %439 = arith.subf %436, %432 : vector<1x8xf32>
      %cst_70 = arith.constant 0.000000e+00 : f32
      %440 = vector.broadcast %cst_70 : f32 to vector<1x8xf32>
      %441 = arith.maximumf %439, %440 : vector<1x8xf32>
      %442 = arith.subf %438, %434 : vector<1x8xf32>
      %cst_71 = arith.constant 0.000000e+00 : f32
      %443 = vector.broadcast %cst_71 : f32 to vector<1x8xf32>
      %444 = arith.maximumf %442, %443 : vector<1x8xf32>
      %445 = arith.mulf %441, %444 : vector<1x8xf32>
      %446 = arith.subf %418, %416 : f32
      %447 = arith.subf %419, %417 : f32
      %448 = arith.mulf %446, %447 : f32
      %449 = vector.broadcast %448 : f32 to vector<1x8xf32>
      %450 = arith.addf %449, %56 : vector<1x8xf32>
      %451 = arith.subf %450, %445 : vector<1x8xf32>
      %cst_72 = arith.constant 9.99999996E-13 : f32
      %452 = vector.broadcast %cst_72 : f32 to vector<1x8xf32>
      %453 = arith.maximumf %451, %452 : vector<1x8xf32>
      %454 = arith.divf %445, %453 : vector<1x8xf32>
      %cst_73 = arith.constant -1.000000e+00 : f32
      %455 = vector.broadcast %cst_73 : f32 to vector<1x8xf32>
      %456 = arith.select %430, %454, %455 : vector<1x8xi1>, vector<1x8xf32>
      %cst_74 = arith.constant dense<0xFF800000> : vector<1xf32>
      %457 = vector.multi_reduction <maximumf>, %456, %cst_74 [1] : vector<1x8xf32> to vector<1xf32>
      %458 = vector.shape_cast %457 : vector<1xf32> to vector<1x1xf32>
      %459 = vector.extract %458[0, 0] : f32 from vector<1x1xf32>
      %460 = arith.extui %430 : vector<1x8xi1> to vector<1x8xi32>
      %461 = arith.sitofp %460 : vector<1x8xi32> to vector<1x8xf32>
      %cst_75 = arith.constant dense<0xFF800000> : vector<1xf32>
      %462 = vector.multi_reduction <maximumf>, %461, %cst_75 [1] : vector<1x8xf32> to vector<1xf32>
      %463 = vector.shape_cast %462 : vector<1xf32> to vector<1x1xf32>
      %464 = vector.extract %463[0, 0] : f32 from vector<1x1xf32>
      %cst_76 = arith.constant 0.000000e+00 : f32
      %465 = arith.cmpf ogt, %464, %cst_76 : f32
      %466 = arith.cmpf oge, %459, %42 : f32
      %467 = arith.andi %465, %466 : i1
      %true_77 = arith.constant true
      %468 = arith.xori %415, %true_77 : i1
      %469 = arith.andi %467, %468 : i1
      %470 = arith.select %469, %416, %411 : f32
      %471 = arith.select %469, %417, %412 : f32
      %472 = arith.select %469, %418, %413 : f32
      %473 = arith.select %469, %419, %414 : f32
      %474 = arith.ori %415, %467 : i1
      %c33 = arith.constant 33 : index
      %475 = memref.load %arg2[%c33] : memref<37xf32, #tpu.memory_space<smem>>
      %c34 = arith.constant 34 : index
      %476 = memref.load %arg2[%c34] : memref<37xf32, #tpu.memory_space<smem>>
      %c35 = arith.constant 35 : index
      %477 = memref.load %arg2[%c35] : memref<37xf32, #tpu.memory_space<smem>>
      %c36 = arith.constant 36 : index
      %478 = memref.load %arg2[%c36] : memref<37xf32, #tpu.memory_space<smem>>
      %479 = vector.broadcast %475 : f32 to vector<1x8xf32>
      %480 = arith.cmpf olt, %479, %50 : vector<1x8xf32>
      %481 = vector.broadcast %477 : f32 to vector<1x8xf32>
      %482 = arith.cmpf olt, %50, %481 : vector<1x8xf32>
      %483 = arith.andi %480, %482 : vector<1x8xi1>
      %484 = vector.broadcast %476 : f32 to vector<1x8xf32>
      %485 = arith.cmpf olt, %484, %53 : vector<1x8xf32>
      %486 = arith.andi %483, %485 : vector<1x8xi1>
      %487 = vector.broadcast %478 : f32 to vector<1x8xf32>
      %488 = arith.cmpf olt, %53, %487 : vector<1x8xf32>
      %489 = arith.andi %486, %488 : vector<1x8xi1>
      %490 = vector.broadcast %475 : f32 to vector<1x8xf32>
      %491 = arith.maximumf %490, %44 : vector<1x8xf32>
      %492 = vector.broadcast %476 : f32 to vector<1x8xf32>
      %493 = arith.maximumf %492, %45 : vector<1x8xf32>
      %494 = vector.broadcast %477 : f32 to vector<1x8xf32>
      %495 = arith.minimumf %494, %46 : vector<1x8xf32>
      %496 = vector.broadcast %478 : f32 to vector<1x8xf32>
      %497 = arith.minimumf %496, %47 : vector<1x8xf32>
      %498 = arith.subf %495, %491 : vector<1x8xf32>
      %cst_78 = arith.constant 0.000000e+00 : f32
      %499 = vector.broadcast %cst_78 : f32 to vector<1x8xf32>
      %500 = arith.maximumf %498, %499 : vector<1x8xf32>
      %501 = arith.subf %497, %493 : vector<1x8xf32>
      %cst_79 = arith.constant 0.000000e+00 : f32
      %502 = vector.broadcast %cst_79 : f32 to vector<1x8xf32>
      %503 = arith.maximumf %501, %502 : vector<1x8xf32>
      %504 = arith.mulf %500, %503 : vector<1x8xf32>
      %505 = arith.subf %477, %475 : f32
      %506 = arith.subf %478, %476 : f32
      %507 = arith.mulf %505, %506 : f32
      %508 = vector.broadcast %507 : f32 to vector<1x8xf32>
      %509 = arith.addf %508, %56 : vector<1x8xf32>
      %510 = arith.subf %509, %504 : vector<1x8xf32>
      %cst_80 = arith.constant 9.99999996E-13 : f32
      %511 = vector.broadcast %cst_80 : f32 to vector<1x8xf32>
      %512 = arith.maximumf %510, %511 : vector<1x8xf32>
      %513 = arith.divf %504, %512 : vector<1x8xf32>
      %cst_81 = arith.constant -1.000000e+00 : f32
      %514 = vector.broadcast %cst_81 : f32 to vector<1x8xf32>
      %515 = arith.select %489, %513, %514 : vector<1x8xi1>, vector<1x8xf32>
      %cst_82 = arith.constant dense<0xFF800000> : vector<1xf32>
      %516 = vector.multi_reduction <maximumf>, %515, %cst_82 [1] : vector<1x8xf32> to vector<1xf32>
      %517 = vector.shape_cast %516 : vector<1xf32> to vector<1x1xf32>
      %518 = vector.extract %517[0, 0] : f32 from vector<1x1xf32>
      %519 = arith.extui %489 : vector<1x8xi1> to vector<1x8xi32>
      %520 = arith.sitofp %519 : vector<1x8xi32> to vector<1x8xf32>
      %cst_83 = arith.constant dense<0xFF800000> : vector<1xf32>
      %521 = vector.multi_reduction <maximumf>, %520, %cst_83 [1] : vector<1x8xf32> to vector<1xf32>
      %522 = vector.shape_cast %521 : vector<1xf32> to vector<1x1xf32>
      %523 = vector.extract %522[0, 0] : f32 from vector<1x1xf32>
      %cst_84 = arith.constant 0.000000e+00 : f32
      %524 = arith.cmpf ogt, %523, %cst_84 : f32
      %525 = arith.cmpf oge, %518, %42 : f32
      %526 = arith.andi %524, %525 : i1
      %true_85 = arith.constant true
      %527 = arith.xori %474, %true_85 : i1
      %528 = arith.andi %526, %527 : i1
      %529 = arith.select %528, %475, %470 : f32
      %530 = arith.select %528, %476, %471 : f32
      %531 = arith.select %528, %477, %472 : f32
      %532 = arith.select %528, %478, %473 : f32
      %533 = arith.subf %531, %529 : f32
      %534 = arith.subf %532, %530 : f32
      %c0_86 = arith.constant 0 : index
      %535 = memref.load %arg8[%c0_86] : memref<4xf32, #tpu.memory_space<smem>>
      memref.store %529, %arg8[%c0_86] : memref<4xf32, #tpu.memory_space<smem>>
      %c1_87 = arith.constant 1 : index
      %536 = memref.load %arg8[%c1_87] : memref<4xf32, #tpu.memory_space<smem>>
      memref.store %530, %arg8[%c1_87] : memref<4xf32, #tpu.memory_space<smem>>
      %c2_88 = arith.constant 2 : index
      %537 = memref.load %arg8[%c2_88] : memref<4xf32, #tpu.memory_space<smem>>
      memref.store %533, %arg8[%c2_88] : memref<4xf32, #tpu.memory_space<smem>>
      %c3_89 = arith.constant 3 : index
      %538 = memref.load %arg8[%c3_89] : memref<4xf32, #tpu.memory_space<smem>>
      memref.store %534, %arg8[%c3_89] : memref<4xf32, #tpu.memory_space<smem>>
      %cst_90 = arith.constant 1.600000e+01 : f32
      %539 = arith.divf %cst_90, %533 : f32
      %cst_91 = arith.constant 1.600000e+01 : f32
      %540 = arith.divf %cst_91, %534 : f32
      %541 = vector.broadcast %529 : f32 to vector<1x8xf32>
      %542 = arith.subf %44, %541 : vector<1x8xf32>
      %cst_92 = arith.constant 0.000000e+00 : f32
      %543 = vector.broadcast %cst_92 : f32 to vector<1x8xf32>
      %544 = arith.maximumf %543, %542 : vector<1x8xf32>
      %545 = vector.broadcast %533 : f32 to vector<1x8xf32>
      %546 = arith.minimumf %545, %544 : vector<1x8xf32>
      %547 = vector.broadcast %539 : f32 to vector<1x8xf32>
      %548 = arith.mulf %546, %547 : vector<1x8xf32>
      %549 = vector.broadcast %530 : f32 to vector<1x8xf32>
      %550 = arith.subf %45, %549 : vector<1x8xf32>
      %cst_93 = arith.constant 0.000000e+00 : f32
      %551 = vector.broadcast %cst_93 : f32 to vector<1x8xf32>
      %552 = arith.maximumf %551, %550 : vector<1x8xf32>
      %553 = vector.broadcast %534 : f32 to vector<1x8xf32>
      %554 = arith.minimumf %553, %552 : vector<1x8xf32>
      %555 = vector.broadcast %540 : f32 to vector<1x8xf32>
      %556 = arith.mulf %554, %555 : vector<1x8xf32>
      %557 = vector.broadcast %529 : f32 to vector<1x8xf32>
      %558 = arith.subf %46, %557 : vector<1x8xf32>
      %cst_94 = arith.constant 0.000000e+00 : f32
      %559 = vector.broadcast %cst_94 : f32 to vector<1x8xf32>
      %560 = arith.maximumf %559, %558 : vector<1x8xf32>
      %561 = vector.broadcast %533 : f32 to vector<1x8xf32>
      %562 = arith.minimumf %561, %560 : vector<1x8xf32>
      %563 = vector.broadcast %539 : f32 to vector<1x8xf32>
      %564 = arith.mulf %562, %563 : vector<1x8xf32>
      %565 = vector.broadcast %530 : f32 to vector<1x8xf32>
      %566 = arith.subf %47, %565 : vector<1x8xf32>
      %cst_95 = arith.constant 0.000000e+00 : f32
      %567 = vector.broadcast %cst_95 : f32 to vector<1x8xf32>
      %568 = arith.maximumf %567, %566 : vector<1x8xf32>
      %569 = vector.broadcast %534 : f32 to vector<1x8xf32>
      %570 = arith.minimumf %569, %568 : vector<1x8xf32>
      %571 = vector.broadcast %540 : f32 to vector<1x8xf32>
      %572 = arith.mulf %570, %571 : vector<1x8xf32>
      %573 = tpu.concatenate %548, %556, %564, %572 in 0 : vector<1x8xf32>, vector<1x8xf32>, vector<1x8xf32>, vector<1x8xf32> -> vector<4x8xf32>
      %c0_96 = arith.constant 0 : index
      %c0_97 = arith.constant 0 : index
      %c0_98 = arith.constant 0 : index
      %574 = vector.load %arg6[%c0_96, %c0_97, %c0_98] : memref<1x4x8xf32, #tpu.memory_space<vmem>>, vector<1x4x8xf32>
      %575 = vector.shape_cast %574 : vector<1x4x8xf32> to vector<4x8xf32>
      %576 = vector.shape_cast %573 : vector<4x8xf32> to vector<1x4x8xf32>
      tpu.vector_store %arg6[%c0_96, %c0_97, %c0_98], %576 {strides = array<i32>} : memref<1x4x8xf32, #tpu.memory_space<vmem>>, vector<1x4x8xf32>,
      %cst_99 = arith.constant 0.000000e+00 : f32
      %577 = vector.broadcast %cst_99 : f32 to vector<16x16xf32>
      %c0_100 = arith.constant 0 : index
      %c0_101 = arith.constant 0 : index
      %578 = vector.load %arg7[%c0_100, %c0_101] : memref<16x16xf32, #tpu.memory_space<vmem>>, vector<16x16xf32>
      tpu.vector_store %arg7[%c0_100, %c0_101], %577 {strides = array<i32>} : memref<16x16xf32, #tpu.memory_space<vmem>>, vector<16x16xf32>,
    } else {
    }
    %c0 = arith.constant 0 : index
    %3 = memref.load %arg8[%c0] : memref<4xf32, #tpu.memory_space<smem>>
    %c2 = arith.constant 2 : index
    %4 = memref.load %arg8[%c2] : memref<4xf32, #tpu.memory_space<smem>>
    %c16_i32 = arith.constant 16 : i32
    %5 = arith.muli %arg1, %c16_i32 : i32
    %6 = arith.sitofp %5 : i32 to f32
    %7 = tpu.iota {dimensions = array<i32: 0>} : vector<16x16xi32>
    %8 = arith.sitofp %7 : vector<16x16xi32> to vector<16x16xf32>
    %9 = vector.broadcast %6 : f32 to vector<16x16xf32>
    %10 = arith.addf %8, %9 : vector<16x16xf32>
    %11 = tpu.iota {dimensions = array<i32: 1>} : vector<16x16xi32>
    %12 = arith.sitofp %11 : vector<16x16xi32> to vector<16x16xf32>
    %cst = arith.constant 5.000000e-01 : f32
    %13 = vector.broadcast %cst : f32 to vector<16x16xf32>
    %14 = arith.addf %12, %13 : vector<16x16xf32>
    %cst_1 = arith.constant 6.250000e-02 : f32
    %15 = arith.mulf %4, %cst_1 : f32
    %16 = vector.broadcast %15 : f32 to vector<16x16xf32>
    %17 = arith.mulf %14, %16 : vector<16x16xf32>
    %cst_2 = arith.constant 5.000000e-01 : f32
    %18 = vector.broadcast %cst_2 : f32 to vector<16x16xf32>
    %19 = arith.subf %17, %18 : vector<16x16xf32>
    %cst_3 = arith.constant 1.000000e+00 : f32
    %20 = arith.subf %4, %cst_3 : f32
    %cst_4 = arith.constant 0.000000e+00 : f32
    %21 = vector.broadcast %cst_4 : f32 to vector<16x16xf32>
    %22 = arith.maximumf %21, %19 : vector<16x16xf32>
    %23 = vector.broadcast %20 : f32 to vector<16x16xf32>
    %24 = arith.minimumf %23, %22 : vector<16x16xf32>
    %25 = vector.broadcast %3 : f32 to vector<16x16xf32>
    %26 = arith.addf %24, %25 : vector<16x16xf32>
    %27 = arith.subf %26, %10 : vector<16x16xf32>
    %28 = math.absf %27 : vector<16x16xf32>
    %cst_5 = arith.constant 1.000000e+00 : f32
    %29 = vector.broadcast %cst_5 : f32 to vector<16x16xf32>
    %30 = arith.subf %29, %28 : vector<16x16xf32>
    %cst_6 = arith.constant 0.000000e+00 : f32
    %31 = vector.broadcast %cst_6 : f32 to vector<16x16xf32>
    %32 = arith.maximumf %31, %30 : vector<16x16xf32>
    %c0_7 = arith.constant 0 : index
    %c0_8 = arith.constant 0 : index
    %33 = vector.load %arg7[%c0_7, %c0_8] : memref<16x16xf32, #tpu.memory_space<vmem>>, vector<16x16xf32>
    %c0_9 = arith.constant 0 : index
    %c0_10 = arith.constant 0 : index
    %34 = vector.load %arg4[%c0_9, %c0_10] : memref<16x16xbf16, #tpu.memory_space<vmem>>, vector<16x16xbf16>
    %35 = arith.truncf %32 : vector<16x16xf32> to vector<16x16xbf16>
    %cst_11 = arith.constant dense<0.000000e+00> : vector<16x16xf32>
    %36 = tpu.matmul %34, %35, %cst_11 {dimension_numbers = #tpu.dot_dimension_numbers<[1], [0], [0], [1], [0, 0, 1, 1], [], []>} : vector<16x16xbf16>, vector<16x16xbf16>, vector<16x16xf32> -> vector<16x16xf32>
    %37 = arith.addf %33, %36 : vector<16x16xf32>
    %c0_12 = arith.constant 0 : index
    %c0_13 = arith.constant 0 : index
    %38 = vector.load %arg7[%c0_12, %c0_13] : memref<16x16xf32, #tpu.memory_space<vmem>>, vector<16x16xf32>
    tpu.vector_store %arg7[%c0_12, %c0_13], %37 {strides = array<i32>} : memref<16x16xf32, #tpu.memory_space<vmem>>, vector<16x16xf32>,
    %c0_i32_14 = arith.constant 0 : i32
    %39 = arith.cmpi eq, %arg1, %c0_i32_14 : i32
    %40 = arith.extui %39 : i1 to i32
    %c0_i32_15 = arith.constant 0 : i32
    %41 = arith.cmpi ne, %40, %c0_i32_15 : i32
    scf.if %41 {
      %c1 = arith.constant 1 : index
      %42 = memref.load %arg8[%c1] : memref<4xf32, #tpu.memory_space<smem>>
      %c3 = arith.constant 3 : index
      %43 = memref.load %arg8[%c3] : memref<4xf32, #tpu.memory_space<smem>>
      %44 = tpu.iota {dimensions = array<i32: 0>} : vector<16x16xi32>
      %45 = arith.sitofp %44 : vector<16x16xi32> to vector<16x16xf32>
      %46 = tpu.iota {dimensions = array<i32: 1>} : vector<16x16xi32>
      %47 = arith.sitofp %46 : vector<16x16xi32> to vector<16x16xf32>
      %cst_16 = arith.constant 5.000000e-01 : f32
      %48 = vector.broadcast %cst_16 : f32 to vector<16x16xf32>
      %49 = arith.addf %45, %48 : vector<16x16xf32>
      %cst_17 = arith.constant 6.250000e-02 : f32
      %50 = arith.mulf %43, %cst_17 : f32
      %51 = vector.broadcast %50 : f32 to vector<16x16xf32>
      %52 = arith.mulf %49, %51 : vector<16x16xf32>
      %cst_18 = arith.constant 5.000000e-01 : f32
      %53 = vector.broadcast %cst_18 : f32 to vector<16x16xf32>
      %54 = arith.subf %52, %53 : vector<16x16xf32>
      %cst_19 = arith.constant 1.000000e+00 : f32
      %55 = arith.subf %43, %cst_19 : f32
      %cst_20 = arith.constant 0.000000e+00 : f32
      %56 = vector.broadcast %cst_20 : f32 to vector<16x16xf32>
      %57 = arith.maximumf %56, %54 : vector<16x16xf32>
      %58 = vector.broadcast %55 : f32 to vector<16x16xf32>
      %59 = arith.minimumf %58, %57 : vector<16x16xf32>
      %60 = vector.broadcast %42 : f32 to vector<16x16xf32>
      %61 = arith.addf %59, %60 : vector<16x16xf32>
      %62 = arith.subf %61, %47 : vector<16x16xf32>
      %63 = math.absf %62 : vector<16x16xf32>
      %cst_21 = arith.constant 1.000000e+00 : f32
      %64 = vector.broadcast %cst_21 : f32 to vector<16x16xf32>
      %65 = arith.subf %64, %63 : vector<16x16xf32>
      %cst_22 = arith.constant 0.000000e+00 : f32
      %66 = vector.broadcast %cst_22 : f32 to vector<16x16xf32>
      %67 = arith.maximumf %66, %65 : vector<16x16xf32>
      %68 = arith.truncf %67 : vector<16x16xf32> to vector<16x16xbf16>
      %c0_23 = arith.constant 0 : index
      %c0_24 = arith.constant 0 : index
      %69 = vector.load %arg7[%c0_23, %c0_24] : memref<16x16xf32, #tpu.memory_space<vmem>>, vector<16x16xf32>
      %70 = arith.truncf %69 : vector<16x16xf32> to vector<16x16xbf16>
      %cst_25 = arith.constant dense<0.000000e+00> : vector<16x16xf32>
      %71 = tpu.matmul %68, %70, %cst_25 {dimension_numbers = #tpu.dot_dimension_numbers<[1], [0], [0], [1], [0, 0, 1, 1], [], []>} : vector<16x16xbf16>, vector<16x16xbf16>, vector<16x16xf32> -> vector<16x16xf32>
      %c0_26 = arith.constant 0 : index
      %c0_27 = arith.constant 0 : index
      %c0_28 = arith.constant 0 : index
      %72 = vector.load %arg5[%c0_26, %c0_27, %c0_28] : memref<1x16x16xf32, #tpu.memory_space<vmem>>, vector<1x16x16xf32>
      %73 = vector.shape_cast %72 : vector<1x16x16xf32> to vector<16x16xf32>
      %74 = vector.shape_cast %71 : vector<16x16xf32> to vector<1x16x16xf32>
      tpu.vector_store %arg5[%c0_26, %c0_27, %c0_28], %74 {strides = array<i32>} : memref<1x16x16xf32, #tpu.memory_space<vmem>>, vector<1x16x16xf32>,
    } else {
    }
    return
  }
  func.func @transform_0(%arg0: i32, %arg1: i32) -> i32 {
    %c0_i32 = arith.constant 0 : i32
    %c0_i32_0 = arith.constant 0 : i32
    return %c0_i32 : i32
  }
  func.func @transform_1(%arg0: i32, %arg1: i32) -> (i32, i32) {
    %c0_i32 = arith.constant 0 : i32
    %c0_i32_0 = arith.constant 0 : i32
    %c0_i32_1 = arith.constant 0 : i32
    return %c0_i32, %c0_i32_0 : i32, i32
  }
  func.func @transform_2(%arg0: i32, %arg1: i32) -> (i32, i32) {
    %c0_i32 = arith.constant 0 : i32
    return %arg0, %arg1 : i32, i32
  }
  func.func @transform_3(%arg0: i32, %arg1: i32) -> (i32, i32, i32) {
    %c0_i32 = arith.constant 0 : i32
    %c0_i32_0 = arith.constant 0 : i32
    %c0_i32_1 = arith.constant 0 : i32
    return %arg0, %c0_i32, %c0_i32_0 : i32, i32, i32
  }
  func.func @transform_4(%arg0: i32, %arg1: i32) -> (i32, i32, i32) {
    %c0_i32 = arith.constant 0 : i32
    %c0_i32_0 = arith.constant 0 : i32
    %c0_i32_1 = arith.constant 0 : i32
    return %arg0, %c0_i32, %c0_i32_0 : i32, i32, i32
  }
}

</mosaic_0001>

<llo_original>
// kernel: tpu_custom_call.1
$region0: #{tpu_custom_call.1}
  #allocation0 [shape = 'u32[]', space=smem, size = 0x4, offset = 0x4, fixed_abs, tag = 'smem constant byte address 0x4 - core index']
  #allocation1 [shape = 'u32[72,128]{1,0:T(1,128)}', space=vmem, size = 0x9000, scoped, tag = 'internal scratch']
  #allocation2 [shape = 'f32[16,16]{1,0:T(8,128)}', space=vmem, size = 0x2000, scoped, tag = 'scratch operand']
  #allocation3 [shape = 'f32[4]{0:T(128)}', space=smem, size = 0x200, scoped, tag = 'scratch operand']
  %s0 = inlined_call_operand.vmem [shape: f32[37], index: 0, kind: input, shape index: {}]
  %s1 = inlined_call_operand.vmem [shape: f32[4,8], index: 1, kind: input, shape index: {}]
  %s2 = inlined_call_operand.vmem [shape: bf16[64,16], index: 2, kind: input, shape index: {}]
  %s3 = inlined_call_operand.hbm [shape: f32[4,16,16], index: 3, kind: output, shape index: {0}]
  %s4 = inlined_call_operand.hbm [shape: f32[4,4,8], index: 4, kind: output, shape index: {1}]
  %5 = xla_tuple %s3, %s4
  %s6 = sld [smem:[#allocation0]]
  $region65: #{tpu_custom_call.1} parent=0
    _
  %s8 = ssub.s32 1, %s6
  %s9 = scalar_select 0, %s8, %s6
  $region1: #{tpu_custom_call.1} parent=0
    #allocation4 [shape = 'u8[512]{0}', space=smem, size = 0x200, scoped, tag = 'input window, operand 0, single buffered']
    #allocation5 [shape = 's32[2]{0}', space=sflag, size = 0x8, scoped, tag = 'scoped memory for tpu_custom_call.1']
    #allocation6 [shape = 's32[2]{0}', space=sflag, size = 0x8, scoped, tag = 'scoped memory for tpu_custom_call.1']
    #allocation7 [shape = 'u8[16384]{0}', space=vmem, size = 0x4000, scoped, tag = 'output window, operand 0']
    #allocation8 [shape = 'u8[4096]{0}', space=vmem, size = 0x1000, scoped, tag = 'output window, operand 1']
    #allocation9 [shape = 's32[2]{0}', space=sflag, size = 0x8, scoped, tag = 'scoped memory for tpu_custom_call.1']
    %10 = vsyncpa [#allocation6], 0
    %11 = vsyncpa [#allocation5], 0
    %s12 = scalar_lea.sflag [#allocation5], 1
    %13 = vsyncpa %s12, 0
    %14 = vsyncpa [#allocation9], 0
    %s15 = scalar_lea.sflag [#allocation9], 1
    %16 = vsyncpa %s15, 0
    loop: start=0, step=1, limit=6
    $region2: #{tpu_custom_call.1} parent=1 // loop_pre_header
      _
    $region3: #{tpu_custom_call.1} parent=1 // loop_header
      %s18 = sphi 0, %s22
      %p19 = scmp.ge.s32.totalorder %s18, 6
      %s25 = sphi 0, %s37
      %s26 = sphi 0, %s33
      %s27 = sphi 0, %s25
      %s28 = sphi 0, %s26
      %s29 = sphi 0, %s27
      %s30 = sphi 0, %s28
      %s38 = sphi 0, %s38
      %s40 = sphi 0, %s38
      %s41 = sphi 0, %s40
      %s55 = sphi 0, %s41
      %s59 = sphi 0, %s59
      %s61 = sphi 0, %s59
      %s62 = sphi 0, %s61
      %s76 = sphi 0, %s62
      %s84 = sphi 0, %s86
      %s87 = sphi 0, %s84
      %s88 = sphi 0, %s87
      %s104 = sphi 0, %s88
      %s110 = sphi 0, %s112
      %s113 = sphi 0, %s110
      %s114 = sphi 0, %s113
      %s130 = sphi 0, %s114
      %s136 = sphi 0, %s138
      %s139 = sphi 0, %s136
      %s140 = sphi 0, %s139
      %s156 = sphi 0, %s140
    $region4: #{tpu_custom_call.1} parent=1 // loop_header_branch
      %21 = sbr.rel (%p19) target = $region8
    $region5: #{tpu_custom_call.1} parent=1 // loop_body
      %s23 = ssub.s32 %s18, 1
      %s24 = ssub.s32 %s18, 2
      %s31 = sadd.s32 1, %s26
      %p32 = scmp.ge.s32.totalorder %s31, 1
      %s33 = scalar_select %p32, 0, %s31
      %s34 = sadd.s32 1, %s25
      %s35 = scalar_select %p32, %s34, %s25
      %p36 = scmp.ge.s32.totalorder %s35, 4
      %s37 = scalar_select %p36, 0, %s35
      %s39 = sadd.s32 %s38, 1
      %p42 = scmp.eq.s32.totalorder %s18, 3
      %p43 = scmp.ne.s32.totalorder %s38, %s40
      %p44 = scmp.eq.s32.totalorder %s18, 0
      %p45 = por %p43, %p44
      %p46 = scmp.ne.s32.totalorder %s38, %s40
      %p47 = scmp.eq.s32.totalorder %s23, 3
      %p48 = por %p46, %p47
      %p49 = scmp.ne.s32.totalorder %s40, %s41
      %p50 = scmp.eq.s32.totalorder %s23, 0
      %p51 = por %p49, %p50
      %p52 = scmp.ne.s32.totalorder %s40, %s41
      %p53 = scmp.eq.s32.totalorder %s24, 3
      %p54 = por %p52, %p53
      %p56 = scmp.ne.s32.totalorder %s41, %s55
      %p57 = scmp.eq.s32.totalorder %s24, 0
      %p58 = por %p56, %p57
      %s60 = sadd.s32 %s59, 1
      %p63 = scmp.eq.s32.totalorder %s18, 3
      %p64 = scmp.ne.s32.totalorder %s59, %s61
      %p65 = scmp.eq.s32.totalorder %s18, 0
      %p66 = por %p64, %p65
      %p67 = scmp.ne.s32.totalorder %s59, %s61
      %p68 = scmp.eq.s32.totalorder %s23, 3
      %p69 = por %p67, %p68
      %p70 = scmp.ne.s32.totalorder %s61, %s62
      %p71 = scmp.eq.s32.totalorder %s23, 0
      %p72 = por %p70, %p71
      %p73 = scmp.ne.s32.totalorder %s61, %s62
      %p74 = scmp.eq.s32.totalorder %s24, 3
      %p75 = por %p73, %p74
      %p77 = scmp.ne.s32.totalorder %s62, %s76
      %p78 = scmp.eq.s32.totalorder %s24, 0
      %p79 = por %p77, %p78
      %s80 = ssub.s32 %s25, %s37
      %s81 = ssub.s32 %s26, %s33
      %s82 = sor.u32 %s80, %s81
      %p83 = scmp.eq.s32.totalorder %s82, 0
      %s85 = sadd.s32 %s84, 1
      %s86 = scalar_select %p83, %s84, %s85
      %p89 = pneg %p83
      %p90 = scmp.eq.s32.totalorder %s18, 3
      %p91 = por %p89, %p90
      %p92 = scmp.ne.s32.totalorder %s84, %s87
      %p93 = scmp.eq.s32.totalorder %s18, 0
      %p94 = por %p92, %p93
      %p95 = scmp.ne.s32.totalorder %s84, %s87
      %p96 = scmp.eq.s32.totalorder %s23, 3
      %p97 = por %p95, %p96
      %p98 = scmp.ne.s32.totalorder %s87, %s88
      %p99 = scmp.eq.s32.totalorder %s23, 0
      %p100 = por %p98, %p99
      %p101 = scmp.ne.s32.totalorder %s87, %s88
      %p102 = scmp.eq.s32.totalorder %s24, 3
      %p103 = por %p101, %p102
      %p105 = scmp.ne.s32.totalorder %s88, %s104
      %p106 = scmp.eq.s32.totalorder %s24, 0
      %p107 = por %p105, %p106
      %s108 = ssub.s32 %s25, %s37
      %p109 = scmp.eq.s32.totalorder %s108, 0
      %s111 = sadd.s32 %s110, 1
      %s112 = scalar_select %p109, %s110, %s111
      %p115 = pneg %p109
      %p116 = scmp.eq.s32.totalorder %s18, 3
      %p117 = por %p115, %p116
      %p118 = scmp.ne.s32.totalorder %s110, %s113
      %p119 = scmp.eq.s32.totalorder %s18, 0
      %p120 = por %p118, %p119
      %p121 = scmp.ne.s32.totalorder %s110, %s113
      %p122 = scmp.eq.s32.totalorder %s23, 3
      %p123 = por %p121, %p122
      %p124 = scmp.ne.s32.totalorder %s113, %s114
      %p125 = scmp.eq.s32.totalorder %s23, 0
      %p126 = por %p124, %p125
      %p127 = scmp.ne.s32.totalorder %s113, %s114
      %p128 = scmp.eq.s32.totalorder %s24, 3
      %p129 = por %p127, %p128
      %p131 = scmp.ne.s32.totalorder %s114, %s130
      %p132 = scmp.eq.s32.totalorder %s24, 0
      %p133 = por %p131, %p132
      %s134 = ssub.s32 %s25, %s37
      %p135 = scmp.eq.s32.totalorder %s134, 0
      %s137 = sadd.s32 %s136, 1
      %s138 = scalar_select %p135, %s136, %s137
      %p141 = pneg %p135
      %p142 = scmp.eq.s32.totalorder %s18, 3
      %p143 = por %p141, %p142
      %p144 = scmp.ne.s32.totalorder %s136, %s139
      %p145 = scmp.eq.s32.totalorder %s18, 0
      %p146 = por %p144, %p145
      %p147 = scmp.ne.s32.totalorder %s136, %s139
      %p148 = scmp.eq.s32.totalorder %s23, 3
      %p149 = por %p147, %p148
      %p150 = scmp.ne.s32.totalorder %s139, %s140
      %p151 = scmp.eq.s32.totalorder %s23, 0
      %p152 = por %p150, %p151
      %p153 = scmp.ne.s32.totalorder %s139, %s140
      %p154 = scmp.eq.s32.totalorder %s24, 3
      %p155 = por %p153, %p154
      %p157 = scmp.ne.s32.totalorder %s140, %s156
      %p158 = scmp.eq.s32.totalorder %s24, 0
      %p159 = por %p157, %p158
      %p160 = scmp.le.s32.totalorder 1, %s18
      %p161 = scmp.lt.s32.totalorder %s18, 5
      %p162 = pnand %p160, %p161
      %p163 = pneg %p162
      // Predicated region
      $region9: #{tpu_custom_call.1} parent=5 // pred_check
        _
      $region10: #{tpu_custom_call.1} parent=5 // pred_check_branch
        %165 = sbr.rel (%p162) target = $region12
      $region11: #{tpu_custom_call.1} parent=5 // pred_region
        %s166 = ssub.s32 %s18, 1
        // Predicated region
        $region13: #{tpu_custom_call.1} parent=11 // pred_check
          %p167 = pneg %p51
        $region14: #{tpu_custom_call.1} parent=11 // pred_check_branch
          %169 = sbr.rel (%p167) target = $region16
        $region15: #{tpu_custom_call.1} parent=11 // pred_region
          %171 = vsyncadd [#allocation6], 0
          %s173 = sshll.u32 %s0, 4
          %s174 = int_to_ptr.vmem [resolvable:$true] %s173
          %176 = dma.vmem_to_smem %s174, 16, [#allocation4], [#allocation6]
        $region16: #{tpu_custom_call.1} parent=11 // pred_fallthru
          _
        // Predicated region
        $region17: #{tpu_custom_call.1} parent=11 // pred_check
          %p177 = pneg %p72
        $region18: #{tpu_custom_call.1} parent=11 // pred_check_branch
          %179 = sbr.rel (%p177) target = $region20
        $region19: #{tpu_custom_call.1} parent=11 // pred_region
          _
        $region20: #{tpu_custom_call.1} parent=11 // pred_fallthru
          _
      $region12: #{tpu_custom_call.1} parent=5 // pred_fallthru
        _
      %p180 = scmp.lt.s32.totalorder %s18, 4
      // Predicated region
      $region21: #{tpu_custom_call.1} parent=5 // pred_check
        %p181 = pneg %p180
      $region22: #{tpu_custom_call.1} parent=5 // pred_check_branch
        %183 = sbr.rel (%p181) target = $region24
      $region23: #{tpu_custom_call.1} parent=5 // pred_region
        // Predicated region
        $region25: #{tpu_custom_call.1} parent=23 // pred_check
          %p184 = pneg %p94
        $region26: #{tpu_custom_call.1} parent=23 // pred_check_branch
          %186 = sbr.rel (%p184) target = $region28
        $region27: #{tpu_custom_call.1} parent=23 // pred_region
          %s187 = smul.u32 2, %s25
          %p188 = scmp.lt.s32.totalorder %s187, 7
          %s189 = scalar_select %p188, %s187, 7
          %p190 = scmp.lt.s32.totalorder %s26, 0
          %s191 = scalar_select %p190, %s26, 0
          %s192 = sadd.s32 %s191, %s189
          %s193 = smul.addr %s192, 4
          %s194 = scalar_lea.vmem %s2, %s193
          %s195 = smul.u32 2, %s25
        $region28: #{tpu_custom_call.1} parent=23 // pred_fallthru
          _
      $region24: #{tpu_custom_call.1} parent=5 // pred_fallthru
        _
      %p196 = scmp.le.s32.totalorder 1, %s18
      %p197 = scmp.lt.s32.totalorder %s18, 5
      %p198 = pnand %p196, %p197
      %p199 = pneg %p198
      // Predicated region
      $region29: #{tpu_custom_call.1} parent=5 // pred_check
        _
      $region30: #{tpu_custom_call.1} parent=5 // pred_check_branch
        %201 = sbr.rel (%p198) target = $region32
      $region31: #{tpu_custom_call.1} parent=5 // pred_region
        %s202 = ssub.s32 %s18, 1
        // Predicated region
        $region33: #{tpu_custom_call.1} parent=31 // pred_check
          %p203 = pneg %p51
        $region34: #{tpu_custom_call.1} parent=31 // pred_check_branch
          %205 = sbr.rel (%p203) target = $region36
        $region35: #{tpu_custom_call.1} parent=31 // pred_region
          %207 = dma.done [#allocation6], 16
        $region36: #{tpu_custom_call.1} parent=31 // pred_fallthru
          _
        %208 = sfence
        %p209 = pneg %p51
        %p210 = pneg %p48
        %p211 = pneg %p72
        %p212 = pneg %p69
        %s213 = smul.u32 2, %s27
        %p214 = scmp.lt.s32.totalorder %s213, 7
        %s215 = scalar_select %p214, %s213, 7
        %p216 = scmp.lt.s32.totalorder %s28, 0
        %s217 = scalar_select %p216, %s28, 0
        %s218 = sadd.s32 %s217, %s215
        %s219 = smul.addr %s218, 4
        %s220 = scalar_lea.vmem %s2, %s219
        %p221 = pneg %p100
        %p222 = pneg %p97
        %p223 = pneg %p126
        %p224 = pneg %p123
        %s225 = sand.u32 %s113, 1
        %s226 = scalar_lea.sflag [#allocation5], %s225
        %s227 = sand.u32 %s113, 1
        %s228 = smul.addr %s227, 16
        %s229 = scalar_lea.vmem [#allocation7], %s228
        %p230 = pneg %p152
        %p231 = pneg %p149
        %s232 = sand.u32 %s139, 1
        %s233 = scalar_lea.sflag [#allocation9], %s232
        %s234 = sand.u32 %s139, 1
        %s235 = smul.addr %s234, 4
        %s236 = scalar_lea.vmem [#allocation8], %s235
        %s237 = smul.u32 2, %s27
        %p238 = scmp.lt.s32.totalorder %s237, 7
        %s239 = scalar_select %p238, %s237, 7
        %p240 = scmp.lt.s32.totalorder %s28, 0
        %s241 = scalar_select %p240, %s28, 0
        %s242 = sadd.s32 %s241, %s239
        %s243 = smul.addr %s242, 4
        %s244 = scalar_lea.vmem %s2, %s243
        %s245 = smul.u32 2, %s27
        %p247 = scmp.eq.s32.totalorder %s28, 0
        // Predicated region
        $region37: #{tpu_custom_call.1} parent=31 // pred_check
          %p248 = pneg %p247
        $region38: #{tpu_custom_call.1} parent=31 // pred_check_branch
          %250 = sbr.rel (%p248) target = $region40
        $region39: #{tpu_custom_call.1} parent=31 // pred_region
          %s251 = sld [smem:[#allocation4]]
          %v252 = vld [vmem:[%s1] sm:$0xf]
          %v254 = vrot.slane %v252, 2
          %v256 = vadd.f32 %v252, %v254
          %v257 = vmul.f32 %v256, 0.5
          %v258 = vrot.slane %v252, 6
          %v260 = vsub.f32 %v252, %v258
          %v262 = vrot.slane %v260, 1
          %v264 = vmul.f32 %v260, %v262
          %s265 = sld [smem:[#allocation4 + $0x1]]
          %s266 = sld [smem:[#allocation4 + $0x2]]
          %s267 = sld [smem:[#allocation4 + $0x3]]
          %s268 = sld [smem:[#allocation4 + $0x4]]
          %p269 = scmp.ge.f32.partialorder %s251, 1.0
          %s270 = sld [smem:[#allocation4 + $0x5]]
          %s271 = sld [smem:[#allocation4 + $0x6]]
          %s272 = sld [smem:[#allocation4 + $0x7]]
          %s273 = sld [smem:[#allocation4 + $0x8]]
          %v274 = vstv %s270
          %vm275 = vcmp.lt.f32.partialorder %v274, %v257
          %v276 = vstv %s272
          %vm277 = vcmp.lt.f32.partialorder %v257, %v276
          %vm278 = vmand %vm275, %vm277
          %v279 = vstv %s271
          %vm280 = vcmp.lt.f32.partialorder %v279, %v257
          %v281 = vsel %vm280, 1, 0
          %v282 = vrot.slane %v281, 1
          %vm283 = vcmp.ne.s32.totalorder %v282, 0
          %vm284 = vmand %vm278, %vm283
          %v285 = vstv %s273
          %vm286 = vcmp.lt.f32.partialorder %v257, %v285
          %v287 = vsel %vm286, 1, 0
          %v288 = vrot.slane %v287, 1
          %vm289 = vcmp.ne.s32.totalorder %v288, 0
          %vm290 = vmand %vm284, %vm289
          %v291 = vmax.f32 %v274, %v252
          %v292 = vmax.f32 %v279, %v252
          %v293 = vmin.f32 %v276, %v252
          %v294 = vmin.f32 %v285, %v252
          %v296 = vrot.slane %v291, 6
          %v298 = vsub.f32 %v293, %v296
          %v299 = vmax.f32 %v298, 0.0
          %v301 = vrot.slane %v292, 6
          %v303 = vsub.f32 %v294, %v301
          %v304 = vmax.f32 %v303, 0.0
          %v306 = vrot.slane %v304, 1
          %v308 = vmul.f32 %v299, %v306
          %s309 = ssub.f32 %s272, %s270
          %s310 = ssub.f32 %s273, %s271
          %s311 = smul.f32 %s309, %s310
          %v312 = vstv %s311
          %v313 = vadd.f32 %v312, %v264
          %v314 = vsub.f32 %v313, %v308
          %v315 = vmax.f32 %v314, 1e-12
          %v316 = vrcp.pop %v315
          %v317 = vmul.f32 %v315, %v316
          %v318 = vsub.f32 1.0, %v317
          %v319 = vmul.f32 %v316, %v318
          %v320 = vadd.f32 %v316, %v319
          %vm321 = vweird.f32 %v315
          %vm322 = vweird.f32 %v316
          %vm323 = vmor %vm321, %vm322
          %v324 = vsel %vm323, %v316, %v320
          %v325 = vand.u32 2147483647, %v315
          %vm326 = vcmp.eq.f32.partialorder %v325, 8.507059e+37
          %v327 = vand.u32 %v315, 2147483648
          %v328 = vor.u32 1.1754944e-38, %v327
          %v329 = vsel %vm326, %v328, %v324
          %v330 = vmul.f32 %v308, %v329
          %v332 = vrot.slane %v330, 2
          %v334 = vsel %vm290, %v332, -1.0
          %vm335 = vcmask 57344
          %v336 = vsel %vm335, %v334, -inf
          %337 = vmax.xlane.f32.xlu0 %v336
          %v338 = vpop.xlane.xlu0 %337
          %s339 = vtos %v338
          %v340 = vsel %vm290, 1, 0
          %v341 = vcvt.s32.f32 %v340
          %v342 = vsel %vm335, %v341, -inf
          %343 = vmax.xlane.f32.xlu0 %v342
          %v344 = vpop.xlane.xlu0 %343
          %s345 = vtos %v344
          %p346 = scmp.gt.f32.partialorder %s345, 0.0
          %p347 = scmp.ge.f32.partialorder %s339, %s251
          %p348 = pnand %p346, %p347
          %p349 = pneg %p348
          %p350 = pneg %p269
          %p351 = pnand %p349, %p350
          %p352 = pneg %p351
          %s353 = scalar_select %p352, %s270, %s265
          %s354 = scalar_select %p352, %s271, %s266
          %s355 = scalar_select %p352, %s272, %s267
          %s356 = scalar_select %p352, %s273, %s268
          %p357 = por %p269, %p349
          %s358 = sld [smem:[#allocation4 + $0x9]]
          %s359 = sld [smem:[#allocation4 + $0xa]]
          %s360 = sld [smem:[#allocation4 + $0xb]]
          %s361 = sld [smem:[#allocation4 + $0xc]]
          %v362 = vstv %s358
          %vm363 = vcmp.lt.f32.partialorder %v362, %v257
          %v364 = vstv %s360
          %vm365 = vcmp.lt.f32.partialorder %v257, %v364
          %vm366 = vmand %vm363, %vm365
          %v367 = vstv %s359
          %vm368 = vcmp.lt.f32.partialorder %v367, %v257
          %v369 = vsel %vm368, 1, 0
          %v370 = vrot.slane %v369, 1
          %vm371 = vcmp.ne.s32.totalorder %v370, 0
          %vm372 = vmand %vm366, %vm371
          %v373 = vstv %s361
          %vm374 = vcmp.lt.f32.partialorder %v257, %v373
          %v375 = vsel %vm374, 1, 0
          %v376 = vrot.slane %v375, 1
          %vm377 = vcmp.ne.s32.totalorder %v376, 0
          %vm378 = vmand %vm372, %vm377
          %v379 = vmax.f32 %v362, %v252
          %v380 = vmax.f32 %v367, %v252
          %v381 = vmin.f32 %v364, %v252
          %v382 = vmin.f32 %v373, %v252
          %v384 = vrot.slane %v379, 6
          %v386 = vsub.f32 %v381, %v384
          %v387 = vmax.f32 %v386, 0.0
          %v389 = vrot.slane %v380, 6
          %v391 = vsub.f32 %v382, %v389
          %v392 = vmax.f32 %v391, 0.0
          %v394 = vrot.slane %v392, 1
          %v396 = vmul.f32 %v387, %v394
          %s397 = ssub.f32 %s360, %s358
          %s398 = ssub.f32 %s361, %s359
          %s399 = smul.f32 %s397, %s398
          %v400 = vstv %s399
          %v401 = vadd.f32 %v400, %v264
          %v402 = vsub.f32 %v401, %v396
          %v403 = vmax.f32 %v402, 1e-12
          %v404 = vrcp.pop %v403
          %v405 = vmul.f32 %v403, %v404
          %v406 = vsub.f32 1.0, %v405
          %v407 = vmul.f32 %v404, %v406
          %v408 = vadd.f32 %v404, %v407
          %vm409 = vweird.f32 %v403
          %vm410 = vweird.f32 %v404
          %vm411 = vmor %vm409, %vm410
          %v412 = vsel %vm411, %v404, %v408
          %v413 = vand.u32 2147483647, %v403
          %vm414 = vcmp.eq.f32.partialorder %v413, 8.507059e+37
          %v415 = vand.u32 %v403, 2147483648
          %v416 = vor.u32 1.1754944e-38, %v415
          %v417 = vsel %vm414, %v416, %v412
          %v418 = vmul.f32 %v396, %v417
          %v420 = vrot.slane %v418, 2
          %v422 = vsel %vm378, %v420, -1.0
          %v423 = vsel %vm335, %v422, -inf
          %424 = vmax.xlane.f32.xlu0 %v423
          %v425 = vpop.xlane.xlu0 %424
          %s426 = vtos %v425
          %v427 = vsel %vm378, 1, 0
          %v428 = vcvt.s32.f32 %v427
          %v429 = vsel %vm335, %v428, -inf
          %430 = vmax.xlane.f32.xlu0 %v429
          %v431 = vpop.xlane.xlu0 %430
          %s432 = vtos %v431
          %p433 = scmp.gt.f32.partialorder %s432, 0.0
          %p434 = scmp.ge.f32.partialorder %s426, %s251
          %p435 = pnand %p433, %p434
          %p436 = pneg %p435
          %p437 = pneg %p357
          %p438 = pnand %p436, %p437
          %p439 = pneg %p438
          %s440 = scalar_select %p439, %s358, %s353
          %s441 = scalar_select %p439, %s359, %s354
          %s442 = scalar_select %p439, %s360, %s355
          %s443 = scalar_select %p439, %s361, %s356
          %p444 = por %p357, %p436
          %s445 = sld [smem:[#allocation4 + $0xd]]
          %s446 = sld [smem:[#allocation4 + $0xe]]
          %s447 = sld [smem:[#allocation4 + $0xf]]
          %s448 = sld [smem:[#allocation4 + $0x10]]
          %v449 = vstv %s445
          %vm450 = vcmp.lt.f32.partialorder %v449, %v257
          %v451 = vstv %s447
          %vm452 = vcmp.lt.f32.partialorder %v257, %v451
          %vm453 = vmand %vm450, %vm452
          %v454 = vstv %s446
          %vm455 = vcmp.lt.f32.partialorder %v454, %v257
          %v456 = vsel %vm455, 1, 0
          %v457 = vrot.slane %v456, 1
          %vm458 = vcmp.ne.s32.totalorder %v457, 0
          %vm459 = vmand %vm453, %vm458
          %v460 = vstv %s448
          %vm461 = vcmp.lt.f32.partialorder %v257, %v460
          %v462 = vsel %vm461, 1, 0
          %v463 = vrot.slane %v462, 1
          %vm464 = vcmp.ne.s32.totalorder %v463, 0
          %vm465 = vmand %vm459, %vm464
          %v466 = vmax.f32 %v449, %v252
          %v467 = vmax.f32 %v454, %v252
          %v468 = vmin.f32 %v451, %v252
          %v469 = vmin.f32 %v460, %v252
          %v471 = vrot.slane %v466, 6
          %v473 = vsub.f32 %v468, %v471
          %v474 = vmax.f32 %v473, 0.0
          %v476 = vrot.slane %v467, 6
          %v478 = vsub.f32 %v469, %v476
          %v479 = vmax.f32 %v478, 0.0
          %v481 = vrot.slane %v479, 1
          %v483 = vmul.f32 %v474, %v481
          %s484 = ssub.f32 %s447, %s445
          %s485 = ssub.f32 %s448, %s446
          %s486 = smul.f32 %s484, %s485
          %v487 = vstv %s486
          %v488 = vadd.f32 %v487, %v264
          %v489 = vsub.f32 %v488, %v483
          %v490 = vmax.f32 %v489, 1e-12
          %v491 = vrcp.pop %v490
          %v492 = vmul.f32 %v490, %v491
          %v493 = vsub.f32 1.0, %v492
          %v494 = vmul.f32 %v491, %v493
          %v495 = vadd.f32 %v491, %v494
          %vm496 = vweird.f32 %v490
          %vm497 = vweird.f32 %v491
          %vm498 = vmor %vm496, %vm497
          %v499 = vsel %vm498, %v491, %v495
          %v500 = vand.u32 2147483647, %v490
          %vm501 = vcmp.eq.f32.partialorder %v500, 8.507059e+37
          %v502 = vand.u32 %v490, 2147483648
          %v503 = vor.u32 1.1754944e-38, %v502
          %v504 = vsel %vm501, %v503, %v499
          %v505 = vmul.f32 %v483, %v504
          %v507 = vrot.slane %v505, 2
          %v509 = vsel %vm465, %v507, -1.0
          %v510 = vsel %vm335, %v509, -inf
          %511 = vmax.xlane.f32.xlu0 %v510
          %v512 = vpop.xlane.xlu0 %511
          %s513 = vtos %v512
          %v514 = vsel %vm465, 1, 0
          %v515 = vcvt.s32.f32 %v514
          %v516 = vsel %vm335, %v515, -inf
          %517 = vmax.xlane.f32.xlu0 %v516
          %v518 = vpop.xlane.xlu0 %517
          %s519 = vtos %v518
          %p520 = scmp.gt.f32.partialorder %s519, 0.0
          %p521 = scmp.ge.f32.partialorder %s513, %s251
          %p522 = pnand %p520, %p521
          %p523 = pneg %p522
          %p524 = pneg %p444
          %p525 = pnand %p523, %p524
          %p526 = pneg %p525
          %s527 = scalar_select %p526, %s445, %s440
          %s528 = scalar_select %p526, %s446, %s441
          %s529 = scalar_select %p526, %s447, %s442
          %s530 = scalar_select %p526, %s448, %s443
          %p531 = por %p444, %p523
          %s532 = sld [smem:[#allocation4 + $0x11]]
          %s533 = sld [smem:[#allocation4 + $0x12]]
          %s534 = sld [smem:[#allocation4 + $0x13]]
          %s535 = sld [smem:[#allocation4 + $0x14]]
          %v536 = vstv %s532
          %vm537 = vcmp.lt.f32.partialorder %v536, %v257
          %v538 = vstv %s534
          %vm539 = vcmp.lt.f32.partialorder %v257, %v538
          %vm540 = vmand %vm537, %vm539
          %v541 = vstv %s533
          %vm542 = vcmp.lt.f32.partialorder %v541, %v257
          %v543 = vsel %vm542, 1, 0
          %v544 = vrot.slane %v543, 1
          %vm545 = vcmp.ne.s32.totalorder %v544, 0
          %vm546 = vmand %vm540, %vm545
          %v547 = vstv %s535
          %vm548 = vcmp.lt.f32.partialorder %v257, %v547
          %v549 = vsel %vm548, 1, 0
          %v550 = vrot.slane %v549, 1
          %vm551 = vcmp.ne.s32.totalorder %v550, 0
          %vm552 = vmand %vm546, %vm551
          %v553 = vmax.f32 %v536, %v252
          %v554 = vmax.f32 %v541, %v252
          %v555 = vmin.f32 %v538, %v252
          %v556 = vmin.f32 %v547, %v252
          %v558 = vrot.slane %v553, 6
          %v560 = vsub.f32 %v555, %v558
          %v561 = vmax.f32 %v560, 0.0
          %v563 = vrot.slane %v554, 6
          %v565 = vsub.f32 %v556, %v563
          %v566 = vmax.f32 %v565, 0.0
          %v568 = vrot.slane %v566, 1
          %v570 = vmul.f32 %v561, %v568
          %s571 = ssub.f32 %s534, %s532
          %s572 = ssub.f32 %s535, %s533
          %s573 = smul.f32 %s571, %s572
          %v574 = vstv %s573
          %v575 = vadd.f32 %v574, %v264
          %v576 = vsub.f32 %v575, %v570
          %v577 = vmax.f32 %v576, 1e-12
          %v578 = vrcp.pop %v577
          %v579 = vmul.f32 %v577, %v578
          %v580 = vsub.f32 1.0, %v579
          %v581 = vmul.f32 %v578, %v580
          %v582 = vadd.f32 %v578, %v581
          %vm583 = vweird.f32 %v577
          %vm584 = vweird.f32 %v578
          %vm585 = vmor %vm583, %vm584
          %v586 = vsel %vm585, %v578, %v582
          %v587 = vand.u32 2147483647, %v577
          %vm588 = vcmp.eq.f32.partialorder %v587, 8.507059e+37
          %v589 = vand.u32 %v577, 2147483648
          %v590 = vor.u32 1.1754944e-38, %v589
          %v591 = vsel %vm588, %v590, %v586
          %v592 = vmul.f32 %v570, %v591
          %v594 = vrot.slane %v592, 2
          %v596 = vsel %vm552, %v594, -1.0
          %v597 = vsel %vm335, %v596, -inf
          %598 = vmax.xlane.f32.xlu0 %v597
          %v599 = vpop.xlane.xlu0 %598
          %s600 = vtos %v599
          %v601 = vsel %vm552, 1, 0
          %v602 = vcvt.s32.f32 %v601
          %v603 = vsel %vm335, %v602, -inf
          %604 = vmax.xlane.f32.xlu0 %v603
          %v605 = vpop.xlane.xlu0 %604
          %s606 = vtos %v605
          %p607 = scmp.gt.f32.partialorder %s606, 0.0
          %p608 = scmp.ge.f32.partialorder %s600, %s251
          %p609 = pnand %p607, %p608
          %p610 = pneg %p609
          %p611 = pneg %p531
          %p612 = pnand %p610, %p611
          %p613 = pneg %p612
          %s614 = scalar_select %p613, %s532, %s527
          %s615 = scalar_select %p613, %s533, %s528
          %s616 = scalar_select %p613, %s534, %s529
          %s617 = scalar_select %p613, %s535, %s530
          %p618 = por %p531, %p610
          %s619 = sld [smem:[#allocation4 + $0x15]]
          %s620 = sld [smem:[#allocation4 + $0x16]]
          %s621 = sld [smem:[#allocation4 + $0x17]]
          %s622 = sld [smem:[#allocation4 + $0x18]]
          %v623 = vstv %s619
          %vm624 = vcmp.lt.f32.partialorder %v623, %v257
          %v625 = vstv %s621
          %vm626 = vcmp.lt.f32.partialorder %v257, %v625
          %vm627 = vmand %vm624, %vm626
          %v628 = vstv %s620
          %vm629 = vcmp.lt.f32.partialorder %v628, %v257
          %v630 = vsel %vm629, 1, 0
          %v631 = vrot.slane %v630, 1
          %vm632 = vcmp.ne.s32.totalorder %v631, 0
          %vm633 = vmand %vm627, %vm632
          %v634 = vstv %s622
          %vm635 = vcmp.lt.f32.partialorder %v257, %v634
          %v636 = vsel %vm635, 1, 0
          %v637 = vrot.slane %v636, 1
          %vm638 = vcmp.ne.s32.totalorder %v637, 0
          %vm639 = vmand %vm633, %vm638
          %v640 = vmax.f32 %v623, %v252
          %v641 = vmax.f32 %v628, %v252
          %v642 = vmin.f32 %v625, %v252
          %v643 = vmin.f32 %v634, %v252
          %v645 = vrot.slane %v640, 6
          %v647 = vsub.f32 %v642, %v645
          %v648 = vmax.f32 %v647, 0.0
          %v650 = vrot.slane %v641, 6
          %v652 = vsub.f32 %v643, %v650
          %v653 = vmax.f32 %v652, 0.0
          %v655 = vrot.slane %v653, 1
          %v657 = vmul.f32 %v648, %v655
          %s658 = ssub.f32 %s621, %s619
          %s659 = ssub.f32 %s622, %s620
          %s660 = smul.f32 %s658, %s659
          %v661 = vstv %s660
          %v662 = vadd.f32 %v661, %v264
          %v663 = vsub.f32 %v662, %v657
          %v664 = vmax.f32 %v663, 1e-12
          %v665 = vrcp.pop %v664
          %v666 = vmul.f32 %v664, %v665
          %v667 = vsub.f32 1.0, %v666
          %v668 = vmul.f32 %v665, %v667
          %v669 = vadd.f32 %v665, %v668
          %vm670 = vweird.f32 %v664
          %vm671 = vweird.f32 %v665
          %vm672 = vmor %vm670, %vm671
          %v673 = vsel %vm672, %v665, %v669
          %v674 = vand.u32 2147483647, %v664
          %vm675 = vcmp.eq.f32.partialorder %v674, 8.507059e+37
          %v676 = vand.u32 %v664, 2147483648
          %v677 = vor.u32 1.1754944e-38, %v676
          %v678 = vsel %vm675, %v677, %v673
          %v679 = vmul.f32 %v657, %v678
          %v681 = vrot.slane %v679, 2
          %v683 = vsel %vm639, %v681, -1.0
          %v684 = vsel %vm335, %v683, -inf
          %685 = vmax.xlane.f32.xlu0 %v684
          %v686 = vpop.xlane.xlu0 %685
          %s687 = vtos %v686
          %v688 = vsel %vm639, 1, 0
          %v689 = vcvt.s32.f32 %v688
          %v690 = vsel %vm335, %v689, -inf
          %691 = vmax.xlane.f32.xlu0 %v690
          %v692 = vpop.xlane.xlu0 %691
          %s693 = vtos %v692
          %p694 = scmp.gt.f32.partialorder %s693, 0.0
          %p695 = scmp.ge.f32.partialorder %s687, %s251
          %p696 = pnand %p694, %p695
          %p697 = pneg %p696
          %p698 = pneg %p618
          %p699 = pnand %p697, %p698
          %p700 = pneg %p699
          %s701 = scalar_select %p700, %s619, %s614
          %s702 = scalar_select %p700, %s620, %s615
          %s703 = scalar_select %p700, %s621, %s616
          %s704 = scalar_select %p700, %s622, %s617
          %p705 = por %p618, %p697
          %s706 = sld [smem:[#allocation4 + $0x19]]
          %s707 = sld [smem:[#allocation4 + $0x1a]]
          %s708 = sld [smem:[#allocation4 + $0x1b]]
          %s709 = sld [smem:[#allocation4 + $0x1c]]
          %v710 = vstv %s706
          %vm711 = vcmp.lt.f32.partialorder %v710, %v257
          %v712 = vstv %s708
          %vm713 = vcmp.lt.f32.partialorder %v257, %v712
          %vm714 = vmand %vm711, %vm713
          %v715 = vstv %s707
          %vm716 = vcmp.lt.f32.partialorder %v715, %v257
          %v717 = vsel %vm716, 1, 0
          %v718 = vrot.slane %v717, 1
          %vm719 = vcmp.ne.s32.totalorder %v718, 0
          %vm720 = vmand %vm714, %vm719
          %v721 = vstv %s709
          %vm722 = vcmp.lt.f32.partialorder %v257, %v721
          %v723 = vsel %vm722, 1, 0
          %v724 = vrot.slane %v723, 1
          %vm725 = vcmp.ne.s32.totalorder %v724, 0
          %vm726 = vmand %vm720, %vm725
          %v727 = vmax.f32 %v710, %v252
          %v728 = vmax.f32 %v715, %v252
          %v729 = vmin.f32 %v712, %v252
          %v730 = vmin.f32 %v721, %v252
          %v732 = vrot.slane %v727, 6
          %v734 = vsub.f32 %v729, %v732
          %v735 = vmax.f32 %v734, 0.0
          %v737 = vrot.slane %v728, 6
          %v739 = vsub.f32 %v730, %v737
          %v740 = vmax.f32 %v739, 0.0
          %v742 = vrot.slane %v740, 1
          %v744 = vmul.f32 %v735, %v742
          %s745 = ssub.f32 %s708, %s706
          %s746 = ssub.f32 %s709, %s707
          %s747 = smul.f32 %s745, %s746
          %v748 = vstv %s747
          %v749 = vadd.f32 %v748, %v264
          %v750 = vsub.f32 %v749, %v744
          %v751 = vmax.f32 %v750, 1e-12
          %v752 = vrcp.pop %v751
          %v753 = vmul.f32 %v751, %v752
          %v754 = vsub.f32 1.0, %v753
          %v755 = vmul.f32 %v752, %v754
          %v756 = vadd.f32 %v752, %v755
          %vm757 = vweird.f32 %v751
          %vm758 = vweird.f32 %v752
          %vm759 = vmor %vm757, %vm758
          %v760 = vsel %vm759, %v752, %v756
          %v761 = vand.u32 2147483647, %v751
          %vm762 = vcmp.eq.f32.partialorder %v761, 8.507059e+37
          %v763 = vand.u32 %v751, 2147483648
          %v764 = vor.u32 1.1754944e-38, %v763
          %v765 = vsel %vm762, %v764, %v760
          %v766 = vmul.f32 %v744, %v765
          %v768 = vrot.slane %v766, 2
          %v770 = vsel %vm726, %v768, -1.0
          %v771 = vsel %vm335, %v770, -inf
          %772 = vmax.xlane.f32.xlu0 %v771
          %v773 = vpop.xlane.xlu0 %772
          %s774 = vtos %v773
          %v775 = vsel %vm726, 1, 0
          %v776 = vcvt.s32.f32 %v775
          %v777 = vsel %vm335, %v776, -inf
          %778 = vmax.xlane.f32.xlu0 %v777
          %v779 = vpop.xlane.xlu0 %778
          %s780 = vtos %v779
          %p781 = scmp.gt.f32.partialorder %s780, 0.0
          %p782 = scmp.ge.f32.partialorder %s774, %s251
          %p783 = pnand %p781, %p782
          %p784 = pneg %p783
          %p785 = pneg %p705
          %p786 = pnand %p784, %p785
          %p787 = pneg %p786
          %s788 = scalar_select %p787, %s706, %s701
          %s789 = scalar_select %p787, %s707, %s702
          %s790 = scalar_select %p787, %s708, %s703
          %s791 = scalar_select %p787, %s709, %s704
          %p792 = por %p705, %p784
          %s793 = sld [smem:[#allocation4 + $0x1d]]
          %s794 = sld [smem:[#allocation4 + $0x1e]]
          %s795 = sld [smem:[#allocation4 + $0x1f]]
          %s796 = sld [smem:[#allocation4 + $0x20]]
          %v797 = vstv %s793
          %vm798 = vcmp.lt.f32.partialorder %v797, %v257
          %v799 = vstv %s795
          %vm800 = vcmp.lt.f32.partialorder %v257, %v799
          %vm801 = vmand %vm798, %vm800
          %v802 = vstv %s794
          %vm803 = vcmp.lt.f32.partialorder %v802, %v257
          %v804 = vsel %vm803, 1, 0
          %v805 = vrot.slane %v804, 1
          %vm806 = vcmp.ne.s32.totalorder %v805, 0
          %vm807 = vmand %vm801, %vm806
          %v808 = vstv %s796
          %vm809 = vcmp.lt.f32.partialorder %v257, %v808
          %v810 = vsel %vm809, 1, 0
          %v811 = vrot.slane %v810, 1
          %vm812 = vcmp.ne.s32.totalorder %v811, 0
          %vm813 = vmand %vm807, %vm812
          %v814 = vmax.f32 %v797, %v252
          %v815 = vmax.f32 %v802, %v252
          %v816 = vmin.f32 %v799, %v252
          %v817 = vmin.f32 %v808, %v252
          %v819 = vrot.slane %v814, 6
          %v821 = vsub.f32 %v816, %v819
          %v822 = vmax.f32 %v821, 0.0
          %v824 = vrot.slane %v815, 6
          %v826 = vsub.f32 %v817, %v824
          %v827 = vmax.f32 %v826, 0.0
          %v829 = vrot.slane %v827, 1
          %v831 = vmul.f32 %v822, %v829
          %s832 = ssub.f32 %s795, %s793
          %s833 = ssub.f32 %s796, %s794
          %s834 = smul.f32 %s832, %s833
          %v835 = vstv %s834
          %v836 = vadd.f32 %v835, %v264
          %v837 = vsub.f32 %v836, %v831
          %v838 = vmax.f32 %v837, 1e-12
          %v839 = vrcp.pop %v838
          %v840 = vmul.f32 %v838, %v839
          %v841 = vsub.f32 1.0, %v840
          %v842 = vmul.f32 %v839, %v841
          %v843 = vadd.f32 %v839, %v842
          %vm844 = vweird.f32 %v838
          %vm845 = vweird.f32 %v839
          %vm846 = vmor %vm844, %vm845
          %v847 = vsel %vm846, %v839, %v843
          %v848 = vand.u32 2147483647, %v838
          %vm849 = vcmp.eq.f32.partialorder %v848, 8.507059e+37
          %v850 = vand.u32 %v838, 2147483648
          %v851 = vor.u32 1.1754944e-38, %v850
          %v852 = vsel %vm849, %v851, %v847
          %v853 = vmul.f32 %v831, %v852
          %v855 = vrot.slane %v853, 2
          %v857 = vsel %vm813, %v855, -1.0
          %v858 = vsel %vm335, %v857, -inf
          %859 = vmax.xlane.f32.xlu0 %v858
          %v860 = vpop.xlane.xlu0 %859
          %s861 = vtos %v860
          %v862 = vsel %vm813, 1, 0
          %v863 = vcvt.s32.f32 %v862
          %v864 = vsel %vm335, %v863, -inf
          %865 = vmax.xlane.f32.xlu0 %v864
          %v866 = vpop.xlane.xlu0 %865
          %s867 = vtos %v866
          %p868 = scmp.gt.f32.partialorder %s867, 0.0
          %p869 = scmp.ge.f32.partialorder %s861, %s251
          %p870 = pnand %p868, %p869
          %p871 = pneg %p870
          %p872 = pneg %p792
          %p873 = pnand %p871, %p872
          %p874 = pneg %p873
          %s875 = scalar_select %p874, %s793, %s788
          %s876 = scalar_select %p874, %s794, %s789
          %s877 = scalar_select %p874, %s795, %s790
          %s878 = scalar_select %p874, %s796, %s791
          %p879 = por %p792, %p871
          %s880 = sld [smem:[#allocation4 + $0x21]]
          %s881 = sld [smem:[#allocation4 + $0x22]]
          %s882 = sld [smem:[#allocation4 + $0x23]]
          %s883 = sld [smem:[#allocation4 + $0x24]]
          %v884 = vstv %s880
          %vm885 = vcmp.lt.f32.partialorder %v884, %v257
          %v886 = vstv %s882
          %vm887 = vcmp.lt.f32.partialorder %v257, %v886
          %vm888 = vmand %vm885, %vm887
          %v889 = vstv %s881
          %vm890 = vcmp.lt.f32.partialorder %v889, %v257
          %v891 = vsel %vm890, 1, 0
          %v892 = vrot.slane %v891, 1
          %vm893 = vcmp.ne.s32.totalorder %v892, 0
          %vm894 = vmand %vm888, %vm893
          %v895 = vstv %s883
          %vm896 = vcmp.lt.f32.partialorder %v257, %v895
          %v897 = vsel %vm896, 1, 0
          %v898 = vrot.slane %v897, 1
          %vm899 = vcmp.ne.s32.totalorder %v898, 0
          %vm900 = vmand %vm894, %vm899
          %v901 = vmax.f32 %v884, %v252
          %v902 = vmax.f32 %v889, %v252
          %v903 = vmin.f32 %v886, %v252
          %v904 = vmin.f32 %v895, %v252
          %v906 = vrot.slane %v901, 6
          %v908 = vsub.f32 %v903, %v906
          %v909 = vmax.f32 %v908, 0.0
          %v911 = vrot.slane %v902, 6
          %v913 = vsub.f32 %v904, %v911
          %v914 = vmax.f32 %v913, 0.0
          %v916 = vrot.slane %v914, 1
          %v918 = vmul.f32 %v909, %v916
          %s919 = ssub.f32 %s882, %s880
          %s920 = ssub.f32 %s883, %s881
          %s921 = smul.f32 %s919, %s920
          %v922 = vstv %s921
          %v923 = vadd.f32 %v922, %v264
          %v924 = vsub.f32 %v923, %v918
          %v925 = vmax.f32 %v924, 1e-12
          %v926 = vrcp.pop %v925
          %v927 = vmul.f32 %v925, %v926
          %v928 = vsub.f32 1.0, %v927
          %v929 = vmul.f32 %v926, %v928
          %v930 = vadd.f32 %v926, %v929
          %vm931 = vweird.f32 %v925
          %vm932 = vweird.f32 %v926
          %vm933 = vmor %vm931, %vm932
          %v934 = vsel %vm933, %v926, %v930
          %v935 = vand.u32 2147483647, %v925
          %vm936 = vcmp.eq.f32.partialorder %v935, 8.507059e+37
          %v937 = vand.u32 %v925, 2147483648
          %v938 = vor.u32 1.1754944e-38, %v937
          %v939 = vsel %vm936, %v938, %v934
          %v940 = vmul.f32 %v918, %v939
          %v942 = vrot.slane %v940, 2
          %v944 = vsel %vm900, %v942, -1.0
          %v945 = vsel %vm335, %v944, -inf
          %946 = vmax.xlane.f32.xlu0 %v945
          %v947 = vpop.xlane.xlu0 %946
          %s948 = vtos %v947
          %v949 = vsel %vm900, 1, 0
          %v950 = vcvt.s32.f32 %v949
          %v951 = vsel %vm335, %v950, -inf
          %952 = vmax.xlane.f32.xlu0 %v951
          %v953 = vpop.xlane.xlu0 %952
          %s954 = vtos %v953
          %p955 = scmp.gt.f32.partialorder %s954, 0.0
          %p956 = scmp.ge.f32.partialorder %s948, %s251
          %p957 = pnand %p955, %p956
          %p958 = pneg %p957
          %p959 = pneg %p879
          %p960 = pnand %p958, %p959
          %p961 = pneg %p960
          %s962 = scalar_select %p961, %s880, %s875
          %s963 = scalar_select %p961, %s881, %s876
          %s964 = scalar_select %p961, %s882, %s877
          %s965 = scalar_select %p961, %s883, %s878
          %s966 = ssub.f32 %s964, %s962
          %s967 = ssub.f32 %s965, %s963
          %s968 = scalar_lea.smem [#allocation3], 0
          %969 = sst [smem:[%s968]] %s962
          %s970 = scalar_lea.smem [#allocation3], 1
          %971 = sst [smem:[%s970]] %s963
          %s972 = scalar_lea.smem [#allocation3], 2
          %973 = sst [smem:[%s972]] %s966
          %s974 = scalar_lea.smem [#allocation3], 3
          %975 = sst [smem:[%s974]] %s967
          %v976 = vstv %s966
          %v977 = vrcp.pop %v976
          %v978 = vmul.f32 %v976, %v977
          %v979 = vsub.f32 1.0, %v978
          %v980 = vmul.f32 %v977, %v979
          %v981 = vadd.f32 %v977, %v980
          %vm982 = vweird.f32 %v976
          %vm983 = vweird.f32 %v977
          %vm984 = vmor %vm982, %vm983
          %v985 = vsel %vm984, %v977, %v981
          %v986 = vand.u32 2147483647, %v976
          %vm987 = vcmp.eq.f32.partialorder %v986, 8.507059e+37
          %v988 = vand.u32 %v976, 2147483648
          %v989 = vor.u32 1.1754944e-38, %v988
          %v990 = vsel %vm987, %v989, %v985
          %s991 = vtos %v990
          %s992 = smul.f32 16.0, %s991
          %v993 = vstv %s967
          %v994 = vrcp.pop %v993
          %v995 = vmul.f32 %v993, %v994
          %v996 = vsub.f32 1.0, %v995
          %v997 = vmul.f32 %v994, %v996
          %v998 = vadd.f32 %v994, %v997
          %vm999 = vweird.f32 %v993
          %vm1000 = vweird.f32 %v994
          %vm1001 = vmor %vm999, %vm1000
          %v1002 = vsel %vm1001, %v994, %v998
          %v1003 = vand.u32 2147483647, %v993
          %vm1004 = vcmp.eq.f32.partialorder %v1003, 8.507059e+37
          %v1005 = vand.u32 %v993, 2147483648
          %v1006 = vor.u32 1.1754944e-38, %v1005
          %v1007 = vsel %vm1004, %v1006, %v1002
          %s1008 = vtos %v1007
          %s1009 = smul.f32 16.0, %s1008
          %v1010 = vstv %s962
          %v1011 = vsub.f32 %v252, %v1010
          %v1012 = vmax.f32 %v1011, 0.0
          %v1013 = vstv %s966
          %v1014 = vmin.f32 %v1013, %v1012
          %v1015 = vstv %s992
          %v1016 = vmul.f32 %v1014, %v1015
          %v1017 = vstv %s963
          %v1018 = vsub.f32 %v252, %v1017
          %v1019 = vmax.f32 %v1018, 0.0
          %v1020 = vstv %s967
          %v1021 = vmin.f32 %v1020, %v1019
          %v1022 = vstv %s1009
          %v1023 = vmul.f32 %v1021, %v1022
          %vm1024 = vcmask 1040384
          %v1025 = vsel %vm1024, %v1016, %v1023
          %vm1026 = vcmask 1041408
          %v1027 = vsel %vm1026, %v1025, %v1016
          %vm1028 = vcmask 1042432
          %v1029 = vsel %vm1028, %v1027, %v1023
          %vm1030 = vcmask 60416
          %1031 = vst.msk [vmem:[%s236] sm:$0xf] %vm1030, %v1029
          %vm1032 = vcmask 130048
          %1033 = vst.msk [vmem:[#allocation2] sm:$0xff] %vm1032, 0.0
          %1034 = vst.msk [vmem:[#allocation2 + $0x8] sm:$0xff] %vm1032, 0.0
        $region40: #{tpu_custom_call.1} parent=31 // pred_fallthru
          _
        %s1035 = sld [smem:[#allocation3]]
        %s1036 = sld [smem:[#allocation3 + $0x2]]
        %s1037 = smul.u32 %s28, 16
        %s1038 = scvt.s32.f32 %s1037
        %v1039 = vlaneseq
        %v1040 = vshrl.u32 %v1039, 7
        %v1041 = vadd.s32 %v1040, 8
        %v1042 = vcvt.s32.f32 %v1040
        %v1043 = vcvt.s32.f32 %v1041
        %v1044 = vstv %s1038
        %v1045 = vadd.f32 %v1042, %v1044
        %v1046 = vadd.f32 %v1043, %v1044
        %v1047 = vlaneseq
        %v1048 = vand.u32 %v1047, 127
        %v1049 = vcvt.s32.f32 %v1048
        %v1050 = vadd.f32 %v1049, 0.5
        %s1051 = smul.f32 %s1036, 0.0625
        %v1052 = vstv %s1051
        %v1053 = vmul.f32 %v1050, %v1052
        %v1054 = vsub.f32 %v1053, 0.5
        %s1055 = ssub.f32 %s1036, 1.0
        %v1056 = vmax.f32 %v1054, 0.0
        %v1057 = vstv %s1055
        %v1058 = vmin.f32 %v1057, %v1056
        %v1059 = vstv %s1035
        %v1060 = vadd.f32 %v1058, %v1059
        %v1061 = vsub.f32 %v1060, %v1045
        %v1062 = vsub.f32 %v1060, %v1046
        %v1063 = vand.u32 2147483647, %v1061
        %v1064 = vand.u32 2147483647, %v1062
        %v1065 = vsub.f32 1.0, %v1063
        %v1066 = vsub.f32 1.0, %v1064
        %v1067 = vmax.f32 %v1065, 0.0
        %v1068 = vmax.f32 %v1066, 0.0
        %v1069 = vld [vmem:[#allocation2] sm:$0xff]
        %v1070 = vld [vmem:[#allocation2 + $0x8] sm:$0xff]
        %v1071 = vld [vmem:[%s244] sm:$0xf]
        %v1072 = vld [vmem:[%s244 + $0x4] sm:$0xf]
        %v1073 = vpack.c.bf16 %v1068, %v1067
        %v1076 = vunpack.c.l.b16 %v1071
        %v1077 = vunpack.c.l.b16 %v1072
        %v1078 = vpack.c.b16 %v1077, %v1076
        %vm1079 = vcmask 130048
        %v1081 = vsel %vm1079, %v1078, 0
        %1083 = vmatpush.bf16.msra.mxu0 0
        %1084 = vmatpush.bf16.msra.mxu0 0
        %1085 = vmatpush.bf16.msra.mxu0 0
        %1086 = vmatpush.bf16.msra.mxu0 0
        %1087 = vmatpush.bf16.msra.mxu0 0
        %1088 = vmatpush.bf16.msra.mxu0 0
        %1089 = vmatpush.bf16.msra.mxu0 0
        %1090 = vmatpush.bf16.msra.mxu0 %v1073
        %1091 = vmatmul.bf16.gmra.mxu0 %v1081
        %v1092 = vpop.f32.mrf.mxu0
        %v1093 = vadd.f32 0.0, %v1092
        %v1094 = vpop.f32.mrf.mxu0
        %v1095 = vadd.f32 0.0, %v1094
        %1096 = vdwg.mxu0
        %v1097 = vadd.f32 %v1069, %v1093
        %v1098 = vadd.f32 %v1070, %v1095
        %1099 = vst.msk [vmem:[#allocation2] sm:$0xff] %vm1079, %v1097
        %1100 = vst.msk [vmem:[#allocation2 + $0x8] sm:$0xff] %vm1079, %v1098
        // Predicated region
        $region41: #{tpu_custom_call.1} parent=31 // pred_check
          %p1101 = pneg %p247
        $region42: #{tpu_custom_call.1} parent=31 // pred_check_branch
          %1103 = sbr.rel (%p1101) target = $region44
        $region43: #{tpu_custom_call.1} parent=31 // pred_region
          %s1104 = sld [smem:[#allocation3 + $0x1]]
          %s1105 = sld [smem:[#allocation3 + $0x3]]
          %v1106 = vadd.f32 %v1042, 0.5
          %v1107 = vadd.f32 %v1043, 0.5
          %s1108 = smul.f32 %s1105, 0.0625
          %v1109 = vstv %s1108
          %v1110 = vmul.f32 %v1106, %v1109
          %v1111 = vmul.f32 %v1107, %v1109
          %v1112 = vsub.f32 %v1110, 0.5
          %v1113 = vsub.f32 %v1111, 0.5
          %s1114 = ssub.f32 %s1105, 1.0
          %v1115 = vmax.f32 %v1112, 0.0
          %v1116 = vmax.f32 %v1113, 0.0
          %v1117 = vstv %s1114
          %v1118 = vmin.f32 %v1117, %v1115
          %v1119 = vmin.f32 %v1117, %v1116
          %v1120 = vstv %s1104
          %v1121 = vadd.f32 %v1118, %v1120
          %v1122 = vadd.f32 %v1119, %v1120
          %v1123 = vsub.f32 %v1121, %v1049
          %v1124 = vsub.f32 %v1122, %v1049
          %v1125 = vand.u32 2147483647, %v1123
          %v1126 = vand.u32 2147483647, %v1124
          %v1127 = vsub.f32 1.0, %v1125
          %v1128 = vsub.f32 1.0, %v1126
          %v1129 = vmax.f32 %v1127, 0.0
          %v1130 = vmax.f32 %v1128, 0.0
          %v1131 = vpack.c.bf16 %v1130, %v1129
          %v1132 = vld [vmem:[#allocation2] sm:$0xff]
          %v1133 = vld [vmem:[#allocation2 + $0x8] sm:$0xff]
          %v1134 = vpack.c.bf16 %v1133, %v1132
          %v1136 = vsel %vm1079, %v1131, 0
          %1138 = vmatpush.bf16.msra.mxu0 0
          %1139 = vmatpush.bf16.msra.mxu0 0
          %1140 = vmatpush.bf16.msra.mxu0 0
          %1141 = vmatpush.bf16.msra.mxu0 0
          %1142 = vmatpush.bf16.msra.mxu0 0
          %1143 = vmatpush.bf16.msra.mxu0 0
          %1144 = vmatpush.bf16.msra.mxu0 0
          %1145 = vmatpush.bf16.msra.mxu0 %v1134
          %1146 = vmatmul.bf16.gmra.mxu0 %v1136
          %v1147 = vpop.f32.mrf.mxu0
          %v1148 = vadd.f32 0.0, %v1147
          %v1149 = vpop.f32.mrf.mxu0
          %v1150 = vadd.f32 0.0, %v1149
          %1151 = vdwg.mxu0
          %1152 = vst.msk [vmem:[%s229] sm:$0xff] %vm1079, %v1148
          %1153 = vst.msk [vmem:[%s229 + $0x8] sm:$0xff] %vm1079, %v1150
        $region44: #{tpu_custom_call.1} parent=31 // pred_fallthru
          _
        %s1154 = sand.u32 %s113, 1
        %s1155 = scalar_lea.sflag [#allocation5], %s1154
        %s1156 = sand.u32 %s113, 1
        %s1157 = smul.addr %s1156, 16
        %s1158 = scalar_lea.vmem [#allocation7], %s1157
        %s1159 = sand.u32 %s139, 1
        %s1160 = scalar_lea.sflag [#allocation9], %s1159
        %s1161 = sand.u32 %s139, 1
        %s1162 = smul.addr %s1161, 4
        %s1163 = scalar_lea.vmem [#allocation8], %s1162
        // Predicated region
        $region45: #{tpu_custom_call.1} parent=31 // pred_check
          %p1164 = pneg %p123
        $region46: #{tpu_custom_call.1} parent=31 // pred_check_branch
          %1166 = sbr.rel (%p1164) target = $region48
        $region47: #{tpu_custom_call.1} parent=31 // pred_region
          %1168 = vsyncadd %s1155, 0
          %s1169 = smul.addr %s27, 2
          %s1170 = smul.addr %s1169, 8
          %s1171 = scalar_lea.hbm %s3, %s1170
          %s1172 = sshll.u32 %s1158, 4
          %s1173 = int_to_ptr.vmem [resolvable:$true] %s1172
          %s1174 = sshll.u32 %s1171, 4
          %s1175 = int_to_ptr.hbm [resolvable:$true] %s1174
          %1180 = dma.vmem_to_hbm [thread:$0]  %s1173, 256, %s1175, %s1155, 128, 128, 8
        $region48: #{tpu_custom_call.1} parent=31 // pred_fallthru
          _
        // Predicated region
        $region49: #{tpu_custom_call.1} parent=31 // pred_check
          %p1181 = pneg %p149
        $region50: #{tpu_custom_call.1} parent=31 // pred_check_branch
          %1183 = sbr.rel (%p1181) target = $region52
        $region51: #{tpu_custom_call.1} parent=31 // pred_region
          %1185 = vsyncadd %s1160, 0
          %s1186 = smul.addr %s27, 4
          %s1187 = scalar_lea.hbm %s4, %s1186
          %s1189 = sshll.u32 %s1163, 4
          %s1190 = int_to_ptr.vmem [resolvable:$true] %s1189
          %s1191 = sshll.u32 %s1187, 4
          %s1192 = int_to_ptr.hbm [resolvable:$true] %s1191
          %1194 = dma.vmem_to_hbm [thread:$0]  %s1190, 64, %s1192, %s1160
        $region52: #{tpu_custom_call.1} parent=31 // pred_fallthru
          _
      $region32: #{tpu_custom_call.1} parent=5 // pred_fallthru
        _
      %p1195 = scmp.le.s32.totalorder 2, %s18
      // Predicated region
      $region53: #{tpu_custom_call.1} parent=5 // pred_check
        %p1196 = pneg %p1195
      $region54: #{tpu_custom_call.1} parent=5 // pred_check_branch
        %1198 = sbr.rel (%p1196) target = $region56
      $region55: #{tpu_custom_call.1} parent=5 // pred_region
        %s1199 = ssub.s32 %s18, 2
        // Predicated region
        $region57: #{tpu_custom_call.1} parent=55 // pred_check
          %p1200 = pneg %p129
        $region58: #{tpu_custom_call.1} parent=55 // pred_check_branch
          %1202 = sbr.rel (%p1200) target = $region60
        $region59: #{tpu_custom_call.1} parent=55 // pred_region
          %s1203 = sand.u32 %s114, 1
          %s1204 = scalar_lea.sflag [#allocation5], %s1203
          %s1205 = sand.u32 %s114, 1
          %s1206 = smul.addr %s1205, 16
          %s1207 = scalar_lea.vmem [#allocation7], %s1206
          %1209 = dma.done %s1204, 256
        $region60: #{tpu_custom_call.1} parent=55 // pred_fallthru
          _
        // Predicated region
        $region61: #{tpu_custom_call.1} parent=55 // pred_check
          %p1210 = pneg %p155
        $region62: #{tpu_custom_call.1} parent=55 // pred_check_branch
          %1212 = sbr.rel (%p1210) target = $region64
        $region63: #{tpu_custom_call.1} parent=55 // pred_region
          %s1213 = sand.u32 %s140, 1
          %s1214 = scalar_lea.sflag [#allocation9], %s1213
          %s1215 = sand.u32 %s140, 1
          %s1216 = smul.addr %s1215, 4
          %s1217 = scalar_lea.vmem [#allocation8], %s1216
          %1219 = dma.done %s1214, 64
        $region64: #{tpu_custom_call.1} parent=55 // pred_fallthru
          _
      $region56: #{tpu_custom_call.1} parent=5 // pred_fallthru
        _
    $region6: #{tpu_custom_call.1} parent=1 // loop_footer
      %s22 = sadd.s32 1, %s18
    $region7: #{tpu_custom_call.1} parent=1 // loop_footer_branch
      %17 = sbr.rel target = $region3
    $region8: #{tpu_custom_call.1} parent=1 // loop_exit
      _
    %1220 = vsyncpa [#allocation5], 1
    %s1221 = scalar_lea.sflag [#allocation5], 1
    %1222 = vsyncpa %s1221, 1
    %1223 = vsyncpa [#allocation9], 1
    %s1224 = scalar_lea.sflag [#allocation9], 1
    %1225 = vsyncpa %s1224, 1
    %1226 = vsyncpa [#allocation6], 1
    %s1227 = scalar_lea.sflag [#allocation6], 1
    %1228 = vsyncpa %s1227, 1

</llo_original>
